<compile_context>
chip_gen: v6e
topology: v6e:2x2x1
jax: 0.10.0
libtpu: 0.0.40
codegen_flags: <defaults>
</compile_context>

<pallas_src>
import functools
import math

import jax
import jax.numpy as jnp
from jax.experimental import pallas as pl
from jax.experimental.pallas import tpu as pltpu

D = 64            # in_channels used by Diff_Pooling_Layer
NEG_SLOPE = 0.2   # PyG GATConv default negative_slope
NEG_INF = -1e9    # safe "minus infinity" for masked softmax logits


def _round_up(x, m):
    return ((x + m - 1) // m) * m


def _pick_graphs_per_step(batch, n, target_rows=256, max_rows=512):
    """Pick graphs-per-step G (a divisor of `batch`).

    Single-TC chips (v5e/v6e) want the packed slab as large as possible to
    amortise the ~0.35us/step overhead and fill the MXU; we aim for
    G*n >= target_rows (256) but take the smallest such divisor so the grid
    keeps extra steps for v7x's two TensorCores when it can.  `max_rows`
    bounds the (G*n)^2 block-diagonal adjacency so it stays well inside the
    v7x scoped-VMEM limit.
    """
    divs = [g for g in range(1, batch + 1) if batch % g == 0 and g * n <= max_rows]
    if not divs:
        divs = [1]
    for g in divs:
        if g * n >= target_rows:
            return g
    return divs[-1]


def _masked_softmax_stats(logits, mask, approx):
    """LeakyReLU + masked softmax -> (unnormalised probs, 1/denominator)."""
    logits = jnp.where(logits > 0, logits, NEG_SLOPE * logits)      # LeakyReLU
    masked = jnp.where(mask, logits, NEG_INF)
    m = jnp.max(masked, axis=-1, keepdims=True)
    p = jnp.where(mask, jnp.exp(masked - m), 0.0)
    denom = jnp.maximum(jnp.sum(p, axis=-1, keepdims=True), 1e-12)  # isolated nodes
    inv = pl.reciprocal(denom, approx=approx)                       # EUP slot
    return p, inv


def sag_score_kernel(x_ref, adjbd_ref, w1aug_ref, pvec_ref, score_ref,
                     *, G, N, L_pad):
    M = G * N

    # ---- layer-1 GATConv projection, packed over all G graphs of this step.
    # w1aug = [W1 | W1 @ a_src^T | W1 @ a_dst^T]  -> (D, D + 2), bf16.
    x_flat = x_ref[...].reshape(M, D)                               # bf16
    h_aug = jnp.dot(x_flat, w1aug_ref[...],
                    preferred_element_type=jnp.float32)             # (M, D+2)
    h1_bf = h_aug[:, :D].astype(jnp.bfloat16)                       # cast once
    a_s = h_aug[:, D:D + 1]                                         # per-source
    a_d = h_aug[:, D + 1:D + 2]                                     # per-dest

    # Block-diagonal adjacency mask over the packed slab (dst, src).
    mask = adjbd_ref[...] > 0                                       # (M, M)

    # Consolidated small parameters (single VMEM block).
    b1 = pvec_ref[0:1, :]                                           # (1, D)
    w2row = pvec_ref[1:2, :]                                        # (1, D) = W2^T
    as2 = pvec_ref[2:3, 0:1]                                        # (1, 1)
    ad2 = pvec_ref[2:3, 1:2]                                        # (1, 1)
    b2 = pvec_ref[2:3, 2:3]                                         # (1, 1)

    # ---- hidden GATConv (D -> D): one block-diagonal masked softmax + one
    # (M, M) x (M, D) bf16 MXU aggregation for all G graphs at once.
    logits = a_d + a_s.T                                            # (M, M)
    p, inv = _masked_softmax_stats(logits, mask, approx=True)
    agg = jnp.dot(p.astype(jnp.bfloat16), h1_bf,
                  preferred_element_type=jnp.float32)               # (M, D)
    attn = jnp.maximum(agg * inv + b1, 0.0)                         # ReLU

    # ---- score GATConv (D -> 1): output width 1, so lane reductions instead
    # of degenerate 1-wide MXU operands.
    z = jnp.sum(attn * w2row, axis=-1, keepdims=True)               # (M, 1)
    z_row = z.T                                                     # (1, M)
    logits2 = ad2 * z + as2 * z_row                                 # (M, M)
    p2, inv2 = _masked_softmax_stats(logits2, mask, approx=False)   # exact recip
    agg2 = jnp.sum(p2 * z_row, axis=-1, keepdims=True)              # (M, 1)
    o2 = agg2 * inv2 + b2
    # Reference module applies ReLU before tanh (score = tanh(ReLU(.))).
    score = jnp.tanh(jnp.maximum(o2, 0.0))                          # (M, 1)

    # Lane-dense store: pad to a multiple of 128 lanes (no masked vst.msk).
    row = score.T                                                   # (1, M)
    if L_pad > M:
        row = jnp.concatenate(
            [row, jnp.zeros((1, L_pad - M), jnp.float32)], axis=-1)
    score_ref[...] = row


def sag_scores(x, adj, params, graphs_per_step=None):
    """Per-node SAGPooling scores. x: (B, N, D) f32, adj: (B, N, N) -> (B, N)."""
    B, N, _ = x.shape
    w1, as1, ad1, b1, w2, as2, ad2, b2 = params

    G = (graphs_per_step if graphs_per_step is not None
         else _pick_graphs_per_step(B, N))
    assert B % G == 0
    S = B // G
    M = G * N
    L_pad = _round_up(M, 128)

    # Fold the layer-1 attention vectors into the projection (MXU, not XLU).
    w1aug = jnp.concatenate([w1, w1 @ as1.T, w1 @ ad1.T], axis=1)   # (D, D+2)

    # bf16 matmul inputs (f32 accumulation).
    x_bf = x.astype(jnp.bfloat16)
    w1aug_bf = w1aug.astype(jnp.bfloat16)

    # Block-diagonal 0/1 adjacency for each packed step: (S, M, M), bf16
    # (int8 would halve HBM on v5e; adj is only compared > 0).
    # TODO(synk): for large N build this mask in-kernel from graph-id iota and
    # K-tile the softmax over src chunks (online softmax) instead of expanding
    # the adjacency G-fold in HBM and holding the full (M, M) block in VMEM.
    a = adj.astype(jnp.bfloat16).reshape(S, G, N, N)
    eye = jnp.eye(G, dtype=jnp.bfloat16)
    adjbd = (a[:, :, :, None, :] * eye[None, :, None, :, None]).reshape(S, M, M)

    # Consolidated small parameters: one (3, D) f32 block
    # row0 = b1, row1 = W2^T, row2[:3] = (att_src2, att_dst2, b2).
    pvec = jnp.zeros((3, D), jnp.float32)
    pvec = pvec.at[0, :].set(b1.reshape(-1))
    pvec = pvec.at[1, :].set(w2.reshape(-1))
    pvec = pvec.at[2, 0].set(as2.reshape(()))
    pvec = pvec.at[2, 1].set(ad2.reshape(()))
    pvec = pvec.at[2, 2].set(b2.reshape(()))

    kernel = functools.partial(sag_score_kernel, G=G, N=N, L_pad=L_pad)

    out = pl.pallas_call(
        kernel,
        out_shape=jax.ShapeDtypeStruct((S, 1, L_pad), jnp.float32),
        grid=(S,),
        in_specs=[
            pl.BlockSpec((G, N, D), lambda s: (s, 0, 0)),
            pl.BlockSpec((None, M, M), lambda s: (s, 0, 0)),
            pl.BlockSpec((D, D + 2), lambda s: (0, 0)),
            pl.BlockSpec((3, D), lambda s: (0, 0)),
        ],
        out_specs=pl.BlockSpec((None, 1, L_pad), lambda s: (s, 0, 0)),
        compiler_params=pltpu.CompilerParams(
            dimension_semantics=("parallel",),
            # 32 MiB is safe on v7x (64 MiB physical); raise on v5e/v6e only
            # after the large-N adjacency K-tiling lands.
            vmem_limit_bytes=32 * 1024 * 1024),
    )(x_bf, adjbd, w1aug_bf, pvec)

    return out[:, 0, :M].reshape(B, N)


def diff_pooling_forward(x, adj, params, ratio):
    """Diff_Pooling_Layer.forward: pool every graph in the batch and merge."""
    B, N, _ = x.shape
    scores = sag_scores(x, adj, params)                    # (B, N)

    # topk(score, ratio) per graph: k = ceil(ratio * N)
    k = int(math.ceil(N * ratio))
    top_vals, top_idx = jax.lax.top_k(scores, k)           # (B, k), (B, k)

    # x' = x[perm] * score[perm]   (multiplier == 1)
    pooled = jnp.take_along_axis(x, top_idx[:, :, None], axis=1) * top_vals[:, :, None]

    # filter_adj: keep only edges whose both endpoints survive (dense A[i, i])
    pooled_adj = jnp.take_along_axis(
        jnp.take_along_axis(adj, top_idx[:, :, None], axis=1),
        top_idx[:, None, :], axis=2)

    # TODO(synk): encode_node_features / PyGSingleGraphData re-encoding is
    # dataset-specific and not defined in the reference; merged pooled node
    # features are returned directly as `new_ins`.
    new_ins = pooled.reshape(B * k, -1)
    return new_ins, pooled_adj, top_idx, top_vals


if __name__ == "__main__":
    key = jax.random.PRNGKey(0)
    B, N = 8, 16          # 8 graphs of 16 nodes -> one packed 128-row step
    ratio = 1.0 / 6.0

    kx, ka, k0, k1, k2, k3, k4, k5 = jax.random.split(key, 8)

    # merged node features (what `batch_data.split_into_batches(ins)` yields)
    x = jax.random.normal(kx, (B, N, D), dtype=jnp.float32)

    # random undirected adjacency + self loops (PyG GATConv adds self loops)
    a = (jax.random.uniform(ka, (B, N, N)) < 0.3).astype(jnp.float32)
    adj = jnp.clip(a + jnp.transpose(a, (0, 2, 1)) + jnp.eye(N, dtype=jnp.float32)[None],
                   0.0, 1.0)

    def glorot(kk, shape):
        fan_in, fan_out = shape[0], shape[-1]
        lim = (6.0 / (fan_in + fan_out)) ** 0.5
        return jax.random.uniform(kk, shape, jnp.float32, -lim, lim)

    params = (
        glorot(k0, (D, D)),               # hidden GATConv: lin weight (64 -> 64)
        glorot(k1, (1, D)),               # hidden GATConv: att_src (heads=1)
        glorot(k2, (1, D)),               # hidden GATConv: att_dst
        jnp.zeros((1, D), jnp.float32),   # hidden GATConv: bias
        glorot(k3, (D, 1)),               # score  GATConv: lin weight (64 -> 1)
        glorot(k4, (1, 1)),               # score  GATConv: att_src
        glorot(k5, (1, 1)),               # score  GATConv: att_dst
        jnp.zeros((1, 1), jnp.float32),   # score  GATConv: bias
    )

    new_ins, pooled_adj, perm, kept_scores = diff_pooling_forward(x, adj, params, ratio)
    jax.block_until_ready(new_ins)

    k = int(math.ceil(N * ratio))
    assert new_ins.shape == (B * k, D)
    assert pooled_adj.shape == (B, k, k)
    assert bool(jnp.all(jnp.isfinite(new_ins)))
    assert bool(jnp.all((kept_scores >= 0.0) & (kept_scores < 1.0)))  # tanh(ReLU(.))
    print("KERNEL_OK")
</pallas_src>

<mosaic_0001>
module attributes {stable_mosaic.version = 11 : i64} {
  func.func @sag_score_kernel(%arg0: i32, %arg1: memref<8x16x64xbf16, #tpu.memory_space<vmem>>, %arg2: memref<1x128x128xbf16, #tpu.memory_space<vmem>>, %arg3: memref<64x66xbf16, #tpu.memory_space<vmem>>, %arg4: memref<3x64xf32, #tpu.memory_space<vmem>>, %arg5: memref<1x1x128xf32, #tpu.memory_space<vmem>>) attributes {dimension_semantics = [#tpu.dimension_semantics<parallel>], iteration_bounds = array<i64: 1>, scalar_prefetch = 0 : i64, scratch_operands = 0 : i64, tpu.core_type = #tpu.core_type<tc>, window_params = [{transform_indices = @transform_0, window_bounds = array<i64: 8, 16, 64>}, {transform_indices = @transform_1, window_bounds = array<i64: 1, 128, 128>}, {pipeline_mode = #tpu.pipeline_mode<synchronous>, transform_indices = @transform_2, window_bounds = array<i64: 64, 66>}, {pipeline_mode = #tpu.pipeline_mode<synchronous>, transform_indices = @transform_3, window_bounds = array<i64: 3, 64>}, {transform_indices = @transform_4, window_bounds = array<i64: 1, 1, 128>}]} {
    %c0 = arith.constant 0 : index
    %c0_0 = arith.constant 0 : index
    %c0_1 = arith.constant 0 : index
    %0 = vector.load %arg1[%c0, %c0_0, %c0_1] : memref<8x16x64xbf16, #tpu.memory_space<vmem>>, vector<8x16x64xbf16>
    %1 = vector.shape_cast %0 : vector<8x16x64xbf16> to vector<128x64xbf16>
    %c0_2 = arith.constant 0 : index
    %c0_3 = arith.constant 0 : index
    %2 = vector.load %arg3[%c0_2, %c0_3] : memref<64x66xbf16, #tpu.memory_space<vmem>>, vector<64x66xbf16>
    %cst = arith.constant dense<0.000000e+00> : vector<128x66xf32>
    %3 = tpu.matmul %1, %2, %cst {dimension_numbers = #tpu.dot_dimension_numbers<[1], [0], [0], [1], [0, 0, 1, 1], [], []>} : vector<128x64xbf16>, vector<64x66xbf16>, vector<128x66xf32> -> vector<128x66xf32>
    %4 = vector.extract_strided_slice %3 {offsets = [0, 0], sizes = [128, 64], strides = [1, 1]} : vector<128x66xf32> to vector<128x64xf32>
    %5 = arith.truncf %4 : vector<128x64xf32> to vector<128x64xbf16>
    %6 = vector.extract_strided_slice %3 {offsets = [0, 64], sizes = [128, 1], strides = [1, 1]} : vector<128x66xf32> to vector<128x1xf32>
    %7 = vector.extract_strided_slice %3 {offsets = [0, 65], sizes = [128, 1], strides = [1, 1]} : vector<128x66xf32> to vector<128x1xf32>
    %c0_4 = arith.constant 0 : index
    %c0_5 = arith.constant 0 : index
    %c0_6 = arith.constant 0 : index
    %8 = vector.load %arg2[%c0_4, %c0_5, %c0_6] : memref<1x128x128xbf16, #tpu.memory_space<vmem>>, vector<1x128x128xbf16>
    %9 = vector.shape_cast %8 : vector<1x128x128xbf16> to vector<128x128xbf16>
    %cst_7 = arith.constant 0.000000e+00 : bf16
    %10 = vector.broadcast %cst_7 : bf16 to vector<128x128xbf16>
    %11 = arith.cmpf ogt, %9, %10 : vector<128x128xbf16>
    %c0_8 = arith.constant 0 : index
    %c0_9 = arith.constant 0 : index
    %12 = vector.load %arg4[%c0_8, %c0_9] : memref<3x64xf32, #tpu.memory_space<vmem>>, vector<1x64xf32>
    %c1 = arith.constant 1 : index
    %c0_10 = arith.constant 0 : index
    %13 = vector.load %arg4[%c1, %c0_10] : memref<3x64xf32, #tpu.memory_space<vmem>>, vector<1x64xf32>
    %c2 = arith.constant 2 : index
    %c0_11 = arith.constant 0 : index
    %14 = vector.load %arg4[%c2, %c0_11] : memref<3x64xf32, #tpu.memory_space<vmem>>, vector<1x1xf32>
    %c2_12 = arith.constant 2 : index
    %c1_13 = arith.constant 1 : index
    %15 = vector.load %arg4[%c2_12, %c1_13] : memref<3x64xf32, #tpu.memory_space<vmem>>, vector<1x1xf32>
    %c2_14 = arith.constant 2 : index
    %c2_15 = arith.constant 2 : index
    %16 = vector.load %arg4[%c2_14, %c2_15] : memref<3x64xf32, #tpu.memory_space<vmem>>, vector<1x1xf32>
    %17 = tpu.transpose %6, [1, 0] : vector<128x1xf32> -> vector<1x128xf32>
    %18 = vector.broadcast %7 : vector<128x1xf32> to vector<128x128xf32>
    %19 = vector.broadcast %17 : vector<1x128xf32> to vector<128x128xf32>
    %20 = arith.addf %18, %19 : vector<128x128xf32>
    %cst_16 = arith.constant 0.000000e+00 : f32
    %21 = vector.broadcast %cst_16 : f32 to vector<128x128xf32>
    %22 = arith.cmpf ogt, %20, %21 : vector<128x128xf32>
    %cst_17 = arith.constant 2.000000e-01 : f32
    %23 = vector.broadcast %cst_17 : f32 to vector<128x128xf32>
    %24 = arith.mulf %23, %20 : vector<128x128xf32>
    %25 = arith.select %22, %20, %24 : vector<128x128xi1>, vector<128x128xf32>
    %cst_18 = arith.constant -1.000000e+09 : f32
    %26 = vector.broadcast %cst_18 : f32 to vector<128x128xf32>
    %27 = arith.select %11, %25, %26 : vector<128x128xi1>, vector<128x128xf32>
    %cst_19 = arith.constant dense<0xFF800000> : vector<128xf32>
    %28 = vector.multi_reduction <maximumf>, %27, %cst_19 [1] : vector<128x128xf32> to vector<128xf32>
    %29 = vector.shape_cast %28 : vector<128xf32> to vector<128x1xf32>
    %30 = vector.broadcast %29 : vector<128x1xf32> to vector<128x128xf32>
    %31 = arith.subf %27, %30 : vector<128x128xf32>
    %32 = math.exp %31 : vector<128x128xf32>
    %cst_20 = arith.constant 0.000000e+00 : f32
    %33 = vector.broadcast %cst_20 : f32 to vector<128x128xf32>
    %34 = arith.select %11, %32, %33 : vector<128x128xi1>, vector<128x128xf32>
    %cst_21 = arith.constant dense<0.000000e+00> : vector<128xf32>
    %35 = vector.multi_reduction <add>, %34, %cst_21 [1] : vector<128x128xf32> to vector<128xf32>
    %36 = vector.shape_cast %35 : vector<128xf32> to vector<128x1xf32>
    %cst_22 = arith.constant 9.99999996E-13 : f32
    %37 = vector.broadcast %cst_22 : f32 to vector<128x1xf32>
    %38 = arith.maximumf %36, %37 : vector<128x1xf32>
    %39 = tpu.reciprocal %38 {approx = true} : vector<128x1xf32> -> vector<128x1xf32>
    %40 = arith.truncf %34 : vector<128x128xf32> to vector<128x128xbf16>
    %cst_23 = arith.constant dense<0.000000e+00> : vector<128x64xf32>
    %41 = tpu.matmul %40, %5, %cst_23 {dimension_numbers = #tpu.dot_dimension_numbers<[1], [0], [0], [1], [0, 0, 1, 1], [], []>} : vector<128x128xbf16>, vector<128x64xbf16>, vector<128x64xf32> -> vector<128x64xf32>
    %42 = vector.broadcast %39 : vector<128x1xf32> to vector<128x64xf32>
    %43 = arith.mulf %41, %42 : vector<128x64xf32>
    %44 = vector.broadcast %12 : vector<1x64xf32> to vector<128x64xf32>
    %45 = arith.addf %43, %44 : vector<128x64xf32>
    %cst_24 = arith.constant 0.000000e+00 : f32
    %46 = vector.broadcast %cst_24 : f32 to vector<128x64xf32>
    %47 = arith.maximumf %45, %46 : vector<128x64xf32>
    %48 = vector.broadcast %13 : vector<1x64xf32> to vector<128x64xf32>
    %49 = arith.mulf %47, %48 : vector<128x64xf32>
    %cst_25 = arith.constant dense<0.000000e+00> : vector<128xf32>
    %50 = vector.multi_reduction <add>, %49, %cst_25 [1] : vector<128x64xf32> to vector<128xf32>
    %51 = vector.shape_cast %50 : vector<128xf32> to vector<128x1xf32>
    %52 = tpu.transpose %51, [1, 0] : vector<128x1xf32> -> vector<1x128xf32>
    %53 = vector.broadcast %15 : vector<1x1xf32> to vector<128x1xf32>
    %54 = arith.mulf %53, %51 : vector<128x1xf32>
    %55 = vector.broadcast %14 : vector<1x1xf32> to vector<1x128xf32>
    %56 = arith.mulf %55, %52 : vector<1x128xf32>
    %57 = vector.broadcast %54 : vector<128x1xf32> to vector<128x128xf32>
    %58 = vector.broadcast %56 : vector<1x128xf32> to vector<128x128xf32>
    %59 = arith.addf %57, %58 : vector<128x128xf32>
    %cst_26 = arith.constant 0.000000e+00 : f32
    %60 = vector.broadcast %cst_26 : f32 to vector<128x128xf32>
    %61 = arith.cmpf ogt, %59, %60 : vector<128x128xf32>
    %cst_27 = arith.constant 2.000000e-01 : f32
    %62 = vector.broadcast %cst_27 : f32 to vector<128x128xf32>
    %63 = arith.mulf %62, %59 : vector<128x128xf32>
    %64 = arith.select %61, %59, %63 : vector<128x128xi1>, vector<128x128xf32>
    %cst_28 = arith.constant -1.000000e+09 : f32
    %65 = vector.broadcast %cst_28 : f32 to vector<128x128xf32>
    %66 = arith.select %11, %64, %65 : vector<128x128xi1>, vector<128x128xf32>
    %cst_29 = arith.constant dense<0xFF800000> : vector<128xf32>
    %67 = vector.multi_reduction <maximumf>, %66, %cst_29 [1] : vector<128x128xf32> to vector<128xf32>
    %68 = vector.shape_cast %67 : vector<128xf32> to vector<128x1xf32>
    %69 = vector.broadcast %68 : vector<128x1xf32> to vector<128x128xf32>
    %70 = arith.subf %66, %69 : vector<128x128xf32>
    %71 = math.exp %70 : vector<128x128xf32>
    %cst_30 = arith.constant 0.000000e+00 : f32
    %72 = vector.broadcast %cst_30 : f32 to vector<128x128xf32>
    %73 = arith.select %11, %71, %72 : vector<128x128xi1>, vector<128x128xf32>
    %cst_31 = arith.constant dense<0.000000e+00> : vector<128xf32>
    %74 = vector.multi_reduction <add>, %73, %cst_31 [1] : vector<128x128xf32> to vector<128xf32>
    %75 = vector.shape_cast %74 : vector<128xf32> to vector<128x1xf32>
    %cst_32 = arith.constant 9.99999996E-13 : f32
    %76 = vector.broadcast %cst_32 : f32 to vector<128x1xf32>
    %77 = arith.maximumf %75, %76 : vector<128x1xf32>
    %78 = tpu.reciprocal %77 : vector<128x1xf32> -> vector<128x1xf32>
    %79 = vector.broadcast %52 : vector<1x128xf32> to vector<128x128xf32>
    %80 = arith.mulf %73, %79 : vector<128x128xf32>
    %cst_33 = arith.constant dense<0.000000e+00> : vector<128xf32>
    %81 = vector.multi_reduction <add>, %80, %cst_33 [1] : vector<128x128xf32> to vector<128xf32>
    %82 = vector.shape_cast %81 : vector<128xf32> to vector<128x1xf32>
    %83 = arith.mulf %82, %78 : vector<128x1xf32>
    %84 = vector.broadcast %16 : vector<1x1xf32> to vector<128x1xf32>
    %85 = arith.addf %83, %84 : vector<128x1xf32>
    %cst_34 = arith.constant 0.000000e+00 : f32
    %86 = vector.broadcast %cst_34 : f32 to vector<128x1xf32>
    %87 = arith.maximumf %85, %86 : vector<128x1xf32>
    %88 = math.tanh %87 : vector<128x1xf32>
    %89 = tpu.transpose %88, [1, 0] : vector<128x1xf32> -> vector<1x128xf32>
    %c0_35 = arith.constant 0 : index
    %c0_36 = arith.constant 0 : index
    %c0_37 = arith.constant 0 : index
    %90 = vector.load %arg5[%c0_35, %c0_36, %c0_37] : memref<1x1x128xf32, #tpu.memory_space<vmem>>, vector<1x1x128xf32>
    %91 = vector.shape_cast %90 : vector<1x1x128xf32> to vector<1x128xf32>
    %92 = vector.shape_cast %89 : vector<1x128xf32> to vector<1x1x128xf32>
    tpu.vector_store %arg5[%c0_35, %c0_36, %c0_37], %92 {strides = array<i32>} : memref<1x1x128xf32, #tpu.memory_space<vmem>>, vector<1x1x128xf32>,
    return
  }
  func.func @transform_0(%arg0: i32) -> (i32, i32, i32) {
    %c0_i32 = arith.constant 0 : i32
    %c0_i32_0 = arith.constant 0 : i32
    %c0_i32_1 = arith.constant 0 : i32
    return %arg0, %c0_i32, %c0_i32_0 : i32, i32, i32
  }
  func.func @transform_1(%arg0: i32) -> (i32, i32, i32) {
    %c0_i32 = arith.constant 0 : i32
    %c0_i32_0 = arith.constant 0 : i32
    %c0_i32_1 = arith.constant 0 : i32
    return %arg0, %c0_i32, %c0_i32_0 : i32, i32, i32
  }
  func.func @transform_2(%arg0: i32) -> (i32, i32) {
    %c0_i32 = arith.constant 0 : i32
    %c0_i32_0 = arith.constant 0 : i32
    %c0_i32_1 = arith.constant 0 : i32
    return %c0_i32, %c0_i32_0 : i32, i32
  }
  func.func @transform_3(%arg0: i32) -> (i32, i32) {
    %c0_i32 = arith.constant 0 : i32
    %c0_i32_0 = arith.constant 0 : i32
    %c0_i32_1 = arith.constant 0 : i32
    return %c0_i32, %c0_i32_0 : i32, i32
  }
  func.func @transform_4(%arg0: i32) -> (i32, i32, i32) {
    %c0_i32 = arith.constant 0 : i32
    %c0_i32_0 = arith.constant 0 : i32
    %c0_i32_1 = arith.constant 0 : i32
    return %arg0, %c0_i32, %c0_i32_0 : i32, i32, i32
  }
}

</mosaic_0001>

<llo_original>
// kernel: tpu_custom_call.1
$region0: #{tpu_custom_call.1}
  #allocation0 [shape = 'u32[]', space=smem, size = 0x4, offset = 0x4, fixed_abs, tag = 'smem constant byte address 0x4 - core index']
  #allocation1 [shape = 'u32[144,128]{1,0:T(1,128)}', space=vmem, size = 0x12000, scoped, tag = 'internal scratch']
  %s0 = inlined_call_operand.hbm [shape: bf16[8,16,64], index: 0, kind: input, shape index: {}]
  %s1 = inlined_call_operand.hbm [shape: bf16[1,128,128], index: 1, kind: input, shape index: {}]
  %s2 = inlined_call_operand.hbm [shape: bf16[64,66], index: 2, kind: input, shape index: {}]
  %s3 = inlined_call_operand.vmem [shape: f32[3,64], index: 3, kind: input, shape index: {}]
  %s4 = inlined_call_operand.hbm [shape: f32[1,1,128], index: 4, kind: output, shape index: {}]
  %s5 = sld [smem:[#allocation0]]
  $region38: #{tpu_custom_call.1} parent=0
    _
  %s7 = ssub.s32 1, %s5
  %s8 = scalar_select 0, %s7, %s5
  $region1: #{tpu_custom_call.1} parent=0
    #allocation2 [shape = 'u8[32768]{0}', space=vmem, size = 0x8000, scoped, tag = 'input window, operand 0, single buffered']
    #allocation3 [shape = 's32[1]{0}', space=sflag, size = 0x4, scoped, tag = 'scoped memory for tpu_custom_call.1']
    #allocation4 [shape = 's32[1]{0}', space=sflag, size = 0x4, scoped, tag = 'scoped memory for tpu_custom_call.1']
    #allocation5 [shape = 'u8[32768]{0}', space=vmem, size = 0x8000, scoped, tag = 'input window, operand 1, single buffered']
    #allocation6 [shape = 's32[1]{0}', space=sflag, size = 0x4, scoped, tag = 'scoped memory for tpu_custom_call.1']
    #allocation7 [shape = 'u8[16384]{0}', space=vmem, size = 0x4000, scoped, tag = 'input window, operand 2, single buffered']
    #allocation8 [shape = 'u8[512]{0}', space=vmem, size = 0x400, scoped, tag = 'output window, operand 0, single buffered']
    %9 = vsyncpa [#allocation3], 0
    %10 = vsyncpa [#allocation6], 0
    %11 = vsyncpa [#allocation4], 0
    // Predicated region
    $region2: #{tpu_custom_call.1} parent=1 // pred_check
      _
    $region3: #{tpu_custom_call.1} parent=1 // pred_check_branch
      %13 = sbr.rel (0) target = $region5
    $region4: #{tpu_custom_call.1} parent=1 // pred_region
      %s15 = ssub.s32 1024, 1024
      %16 = vsyncadd [#allocation3], %s15
      %s17 = sshll.u32 [#allocation2], 4
      %s18 = int_to_ptr.vmem [resolvable:$true] %s17
      %23 = dma.hbm_to_vmem [thread:$0]  %s0, 1024, %s18, [#allocation3], 64, 64, 4
    $region5: #{tpu_custom_call.1} parent=1 // pred_fallthru
      _
    // Predicated region
    $region6: #{tpu_custom_call.1} parent=1 // pred_check
      _
    $region7: #{tpu_custom_call.1} parent=1 // pred_check_branch
      %25 = sbr.rel (0) target = $region9
    $region8: #{tpu_custom_call.1} parent=1 // pred_region
      %s27 = ssub.s32 1024, 1024
      %28 = vsyncadd [#allocation6], %s27
      %s29 = sshll.u32 [#allocation5], 4
      %s30 = int_to_ptr.vmem [resolvable:$true] %s29
      %35 = dma.hbm_to_vmem [thread:$0]  %s1, 1024, %s30, [#allocation6], 64, 64, 4
    $region9: #{tpu_custom_call.1} parent=1 // pred_fallthru
      _
    // Predicated region
    $region10: #{tpu_custom_call.1} parent=1 // pred_check
      _
    $region11: #{tpu_custom_call.1} parent=1 // pred_check_branch
      %37 = sbr.rel (0) target = $region13
    $region12: #{tpu_custom_call.1} parent=1 // pred_region
      %s39 = ssub.s32 512, 512
      %40 = vsyncadd [#allocation6], %s39
      %s41 = sshll.u32 [#allocation7], 4
      %s42 = int_to_ptr.vmem [resolvable:$true] %s41
      %47 = dma.hbm_to_vmem [thread:$0]  %s2, 512, %s42, [#allocation6], 64, 64, 4
    $region13: #{tpu_custom_call.1} parent=1 // pred_fallthru
      _
    // Predicated region
    $region14: #{tpu_custom_call.1} parent=1 // pred_check
      _
    $region15: #{tpu_custom_call.1} parent=1 // pred_check_branch
      %49 = sbr.rel (0) target = $region17
    $region16: #{tpu_custom_call.1} parent=1 // pred_region
      _
    $region17: #{tpu_custom_call.1} parent=1 // pred_fallthru
      _
    // Predicated region
    $region18: #{tpu_custom_call.1} parent=1 // pred_check
      _
    $region19: #{tpu_custom_call.1} parent=1 // pred_check_branch
      %51 = sbr.rel (0) target = $region21
    $region20: #{tpu_custom_call.1} parent=1 // pred_region
      %52 = dma.done [#allocation3], 1024
    $region21: #{tpu_custom_call.1} parent=1 // pred_fallthru
      _
    // Predicated region
    $region22: #{tpu_custom_call.1} parent=1 // pred_check
      _
    $region23: #{tpu_custom_call.1} parent=1 // pred_check_branch
      %54 = sbr.rel (0) target = $region25
    $region24: #{tpu_custom_call.1} parent=1 // pred_region
      %55 = dma.done [#allocation6], 1024
    $region25: #{tpu_custom_call.1} parent=1 // pred_fallthru
      _
    // Predicated region
    $region26: #{tpu_custom_call.1} parent=1 // pred_check
      _
    $region27: #{tpu_custom_call.1} parent=1 // pred_check_branch
      %57 = sbr.rel (0) target = $region29
    $region28: #{tpu_custom_call.1} parent=1 // pred_region
      %58 = dma.done [#allocation6], 512
    $region29: #{tpu_custom_call.1} parent=1 // pred_fallthru
      _
    %v62 = vld [vmem:[#allocation2] sm:$0xf]
    %v63 = vld [vmem:[#allocation2 + $0x4] sm:$0xf]
    %v64 = vld [vmem:[#allocation2 + $0x8] sm:$0xf]
    %v65 = vld [vmem:[#allocation2 + $0xc] sm:$0xf]
    %v66 = vld [vmem:[#allocation2 + $0x10] sm:$0xf]
    %v67 = vld [vmem:[#allocation2 + $0x14] sm:$0xf]
    %v68 = vld [vmem:[#allocation2 + $0x18] sm:$0xf]
    %v69 = vld [vmem:[#allocation2 + $0x1c] sm:$0xf]
    %v70 = vld [vmem:[#allocation2 + $0x20] sm:$0xf]
    %v71 = vld [vmem:[#allocation2 + $0x24] sm:$0xf]
    %v72 = vld [vmem:[#allocation2 + $0x28] sm:$0xf]
    %v73 = vld [vmem:[#allocation2 + $0x2c] sm:$0xf]
    %v74 = vld [vmem:[#allocation2 + $0x30] sm:$0xf]
    %v75 = vld [vmem:[#allocation2 + $0x34] sm:$0xf]
    %v76 = vld [vmem:[#allocation2 + $0x38] sm:$0xf]
    %v77 = vld [vmem:[#allocation2 + $0x3c] sm:$0xf]
    %v78 = vld [vmem:[#allocation7] sm:$0xf]
    %v79 = vld [vmem:[#allocation7 + $0x4] sm:$0xf]
    %v80 = vld [vmem:[#allocation7 + $0x8] sm:$0xf]
    %v81 = vld [vmem:[#allocation7 + $0xc] sm:$0xf]
    %v82 = vld [vmem:[#allocation7 + $0x10] sm:$0xf]
    %v83 = vld [vmem:[#allocation7 + $0x14] sm:$0xf]
    %v84 = vld [vmem:[#allocation7 + $0x18] sm:$0xf]
    %v85 = vld [vmem:[#allocation7 + $0x1c] sm:$0xf]
    %v102 = vunpack.c.l.b16 %v62
    %v103 = vunpack.c.l.b16 %v63
    %v104 = vunpack.c.l.b16 %v64
    %v105 = vunpack.c.l.b16 %v65
    %v106 = vunpack.c.l.b16 %v66
    %v107 = vunpack.c.l.b16 %v67
    %v108 = vunpack.c.l.b16 %v68
    %v109 = vunpack.c.l.b16 %v69
    %v110 = vunpack.c.l.b16 %v70
    %v111 = vunpack.c.l.b16 %v71
    %v112 = vunpack.c.l.b16 %v72
    %v113 = vunpack.c.l.b16 %v73
    %v114 = vunpack.c.l.b16 %v74
    %v115 = vunpack.c.l.b16 %v75
    %v116 = vunpack.c.l.b16 %v76
    %v117 = vunpack.c.l.b16 %v77
    %v118 = vpack.c.b16 %v103, %v102
    %v119 = vpack.c.b16 %v105, %v104
    %v120 = vpack.c.b16 %v107, %v106
    %v121 = vpack.c.b16 %v109, %v108
    %v122 = vpack.c.b16 %v111, %v110
    %v123 = vpack.c.b16 %v113, %v112
    %v124 = vpack.c.b16 %v115, %v114
    %v125 = vpack.c.b16 %v117, %v116
    %v134 = vunpack.c.l.b16 %v78
    %v135 = vunpack.c.l.b16 %v79
    %v136 = vunpack.c.l.b16 %v80
    %v137 = vunpack.c.l.b16 %v81
    %v138 = vunpack.c.l.b16 %v82
    %v139 = vunpack.c.l.b16 %v83
    %v140 = vunpack.c.l.b16 %v84
    %v141 = vunpack.c.l.b16 %v85
    %v142 = vpack.c.b16 %v135, %v134
    %v143 = vpack.c.b16 %v137, %v136
    %v144 = vpack.c.b16 %v139, %v138
    %v145 = vpack.c.b16 %v141, %v140
    %vm150 = vcmask 523264
    %v152 = vsel %vm150, %v118, 0
    %v155 = vsel %vm150, %v119, 0
    %v158 = vsel %vm150, %v120, 0
    %v161 = vsel %vm150, %v121, 0
    %v164 = vsel %vm150, %v122, 0
    %v167 = vsel %vm150, %v123, 0
    %v170 = vsel %vm150, %v124, 0
    %v173 = vsel %vm150, %v125, 0
    %175 = vmatprep.subr.bf16.mxu0 0
    %176 = vmatpush1.bf16.msra.mxu0 0
    %177 = vmatprep.subr.bf16.mxu0 0
    %178 = vmatpush1.bf16.msra.mxu0 0
    %179 = vmatprep.subr.bf16.mxu0 0
    %180 = vmatpush1.bf16.msra.mxu0 0
    %181 = vmatprep.subr.bf16.mxu0 0
    %182 = vmatpush1.bf16.msra.mxu0 0
    %183 = vmatprep.subr.bf16.mxu0 0
    %184 = vmatpush1.bf16.msra.mxu0 %v145
    %185 = vmatprep.subr.bf16.mxu0 0
    %186 = vmatpush1.bf16.msra.mxu0 %v144
    %187 = vmatprep.subr.bf16.mxu0 0
    %188 = vmatpush1.bf16.msra.mxu0 %v143
    %189 = vmatprep.subr.bf16.mxu0 0
    %190 = vmatpush1.bf16.msra.mxu0 %v142
    %191 = vmatprep.subr.bf16.mxu0 0
    %192 = vmatpush2.bf16.msra.mxu0 0
    %193 = vmatprep.subr.bf16.mxu0 0
    %194 = vmatpush2.bf16.msra.mxu0 0
    %195 = vmatprep.subr.bf16.mxu0 0
    %196 = vmatpush2.bf16.msra.mxu0 0
    %197 = vmatprep.subr.bf16.mxu0 0
    %198 = vmatpush2.bf16.msra.mxu0 0
    %199 = vmatprep.subr.bf16.mxu0 0
    %200 = vmatpush2.bf16.msra.mxu0 0
    %201 = vmatprep.subr.bf16.mxu0 0
    %202 = vmatpush2.bf16.msra.mxu0 0
    %203 = vmatprep.subr.bf16.mxu0 0
    %204 = vmatpush2.bf16.msra.mxu0 0
    %205 = vmatprep.subr.bf16.mxu0 0
    %206 = vmatpush2.bf16.msra.mxu0 0
    %207 = vmatprep.mubr.bf16.mxu0 0
    %208 = vmatmul.mubr.bf16.gmra.mxu0 %v152
    %v209 = vpop.f32.mrf.mxu0
    %v210 = vadd.f32 0.0, %v209
    %v211 = vpop.f32.mrf.mxu0
    %v212 = vpop.f32.mrf.mxu0
    %v213 = vadd.f32 0.0, %v212
    %v214 = vpop.f32.mrf.mxu0
    %215 = vmatprep.mubr.bf16.mxu0 0
    %216 = vmatmul.mubr.bf16.gmra.mxu0 %v155
    %v217 = vpop.f32.mrf.mxu0
    %v218 = vadd.f32 0.0, %v217
    %v219 = vpop.f32.mrf.mxu0
    %v220 = vpop.f32.mrf.mxu0
    %v221 = vadd.f32 0.0, %v220
    %v222 = vpop.f32.mrf.mxu0
    %223 = vmatprep.mubr.bf16.mxu0 0
    %224 = vmatmul.mubr.bf16.gmra.mxu0 %v158
    %v225 = vpop.f32.mrf.mxu0
    %v226 = vadd.f32 0.0, %v225
    %v227 = vpop.f32.mrf.mxu0
    %v228 = vpop.f32.mrf.mxu0
    %v229 = vadd.f32 0.0, %v228
    %v230 = vpop.f32.mrf.mxu0
    %231 = vmatprep.mubr.bf16.mxu0 0
    %232 = vmatmul.mubr.bf16.gmra.mxu0 %v161
    %v233 = vpop.f32.mrf.mxu0
    %v234 = vadd.f32 0.0, %v233
    %v235 = vpop.f32.mrf.mxu0
    %v236 = vpop.f32.mrf.mxu0
    %v237 = vadd.f32 0.0, %v236
    %v238 = vpop.f32.mrf.mxu0
    %239 = vmatprep.mubr.bf16.mxu0 0
    %240 = vmatmul.mubr.bf16.gmra.mxu0 %v164
    %v241 = vpop.f32.mrf.mxu0
    %v242 = vadd.f32 0.0, %v241
    %v243 = vpop.f32.mrf.mxu0
    %v244 = vpop.f32.mrf.mxu0
    %v245 = vadd.f32 0.0, %v244
    %v246 = vpop.f32.mrf.mxu0
    %247 = vmatprep.mubr.bf16.mxu0 0
    %248 = vmatmul.mubr.bf16.gmra.mxu0 %v167
    %v249 = vpop.f32.mrf.mxu0
    %v250 = vadd.f32 0.0, %v249
    %v251 = vpop.f32.mrf.mxu0
    %v252 = vpop.f32.mrf.mxu0
    %v253 = vadd.f32 0.0, %v252
    %v254 = vpop.f32.mrf.mxu0
    %255 = vmatprep.mubr.bf16.mxu0 0
    %256 = vmatmul.mubr.bf16.gmra.mxu0 %v170
    %v257 = vpop.f32.mrf.mxu0
    %v258 = vadd.f32 0.0, %v257
    %v259 = vpop.f32.mrf.mxu0
    %v260 = vpop.f32.mrf.mxu0
    %v261 = vadd.f32 0.0, %v260
    %v262 = vpop.f32.mrf.mxu0
    %263 = vmatprep.mubr.bf16.mxu0 0
    %264 = vmatmul.mubr.bf16.gmra.mxu0 %v173
    %v265 = vpop.f32.mrf.mxu0
    %v266 = vadd.f32 0.0, %v265
    %v267 = vpop.f32.mrf.mxu0
    %v268 = vpop.f32.mrf.mxu0
    %v269 = vadd.f32 0.0, %v268
    %v270 = vpop.f32.mrf.mxu0
    %271 = vdwg.mxu0
    %v272 = vpack.c.bf16 %v213, %v210
    %v273 = vpack.c.bf16 %v221, %v218
    %v274 = vpack.c.bf16 %v229, %v226
    %v275 = vpack.c.bf16 %v237, %v234
    %v276 = vpack.c.bf16 %v245, %v242
    %v277 = vpack.c.bf16 %v253, %v250
    %v278 = vpack.c.bf16 %v261, %v258
    %v279 = vpack.c.bf16 %v269, %v266
    %v280 = vld [vmem:[#allocation5] sm:$0xf]
    %v281 = vld [vmem:[#allocation5 + $0x4] sm:$0xf]
    %v282 = vld [vmem:[#allocation5 + $0x8] sm:$0xf]
    %v283 = vld [vmem:[#allocation5 + $0xc] sm:$0xf]
    %v284 = vld [vmem:[#allocation5 + $0x10] sm:$0xf]
    %v285 = vld [vmem:[#allocation5 + $0x14] sm:$0xf]
    %v286 = vld [vmem:[#allocation5 + $0x18] sm:$0xf]
    %v287 = vld [vmem:[#allocation5 + $0x1c] sm:$0xf]
    %v288 = vld [vmem:[#allocation5 + $0x20] sm:$0xf]
    %v289 = vld [vmem:[#allocation5 + $0x24] sm:$0xf]
    %v290 = vld [vmem:[#allocation5 + $0x28] sm:$0xf]
    %v291 = vld [vmem:[#allocation5 + $0x2c] sm:$0xf]
    %v292 = vld [vmem:[#allocation5 + $0x30] sm:$0xf]
    %v293 = vld [vmem:[#allocation5 + $0x34] sm:$0xf]
    %v294 = vld [vmem:[#allocation5 + $0x38] sm:$0xf]
    %v295 = vld [vmem:[#allocation5 + $0x3c] sm:$0xf]
    %vm296 = vcmp.gt.bf16.partialorder %v280, 0
    %vm297 = vcmp.gt.bf16.partialorder %v281, 0
    %vm298 = vcmp.gt.bf16.partialorder %v282, 0
    %vm299 = vcmp.gt.bf16.partialorder %v283, 0
    %vm300 = vcmp.gt.bf16.partialorder %v284, 0
    %vm301 = vcmp.gt.bf16.partialorder %v285, 0
    %vm302 = vcmp.gt.bf16.partialorder %v286, 0
    %vm303 = vcmp.gt.bf16.partialorder %v287, 0
    %vm304 = vcmp.gt.bf16.partialorder %v288, 0
    %vm305 = vcmp.gt.bf16.partialorder %v289, 0
    %vm306 = vcmp.gt.bf16.partialorder %v290, 0
    %vm307 = vcmp.gt.bf16.partialorder %v291, 0
    %vm308 = vcmp.gt.bf16.partialorder %v292, 0
    %vm309 = vcmp.gt.bf16.partialorder %v293, 0
    %vm310 = vcmp.gt.bf16.partialorder %v294, 0
    %vm311 = vcmp.gt.bf16.partialorder %v295, 0
    %v312 = vld [vmem:[%s3] sm:$0x1]
    %v313 = vld [vmem:[%s3 + $0x1] sm:$0x1]
    %v314 = vld [vmem:[%s3 + $0x2] sm:$0x1]
    %331 = vrot.lane.b32.xlu0 %v210, 64
    %v332 = vpop.permute.xlu0 %331
    %333 = vrot.lane.b32.xlu0 %v213, 64
    %v334 = vpop.permute.xlu0 %333
    %335 = vrot.lane.b32.xlu0 %v218, 64
    %v336 = vpop.permute.xlu0 %335
    %337 = vrot.lane.b32.xlu0 %v221, 64
    %v338 = vpop.permute.xlu0 %337
    %339 = vrot.lane.b32.xlu0 %v226, 64
    %v340 = vpop.permute.xlu0 %339
    %341 = vrot.lane.b32.xlu0 %v229, 64
    %v342 = vpop.permute.xlu0 %341
    %343 = vrot.lane.b32.xlu0 %v234, 64
    %v344 = vpop.permute.xlu0 %343
    %345 = vrot.lane.b32.xlu0 %v237, 64
    %v346 = vpop.permute.xlu0 %345
    %347 = vrot.lane.b32.xlu0 %v242, 64
    %v348 = vpop.permute.xlu0 %347
    %349 = vrot.lane.b32.xlu0 %v245, 64
    %v350 = vpop.permute.xlu0 %349
    %351 = vrot.lane.b32.xlu0 %v250, 64
    %v352 = vpop.permute.xlu0 %351
    %353 = vrot.lane.b32.xlu0 %v253, 64
    %v354 = vpop.permute.xlu0 %353
    %355 = vrot.lane.b32.xlu0 %v258, 64
    %v356 = vpop.permute.xlu0 %355
    %357 = vrot.lane.b32.xlu0 %v261, 64
    %v358 = vpop.permute.xlu0 %357
    %359 = vrot.lane.b32.xlu0 %v266, 64
    %v360 = vpop.permute.xlu0 %359
    %361 = vrot.lane.b32.xlu0 %v269, 64
    %v362 = vpop.permute.xlu0 %361
    %379 = vxpose.xlu0.b32.start [1/16] %v332, 128
    %380 = vxpose.xlu0.b32.cont [2/16] %v334, 128
    %381 = vxpose.xlu0.b32.cont [3/16] %v336, 128
    %382 = vxpose.xlu0.b32.cont [4/16] %v338, 128
    %383 = vxpose.xlu0.b32.cont [5/16] %v340, 128
    %384 = vxpose.xlu0.b32.cont [6/16] %v342, 128
    %385 = vxpose.xlu0.b32.cont [7/16] %v344, 128
    %386 = vxpose.xlu0.b32.cont [8/16] %v346, 128
    %387 = vxpose.xlu0.b32.cont [9/16] %v348, 128
    %388 = vxpose.xlu0.b32.cont [10/16] %v350, 128
    %389 = vxpose.xlu0.b32.cont [11/16] %v352, 128
    %390 = vxpose.xlu0.b32.cont [12/16] %v354, 128
    %391 = vxpose.xlu0.b32.cont [13/16] %v356, 128
    %392 = vxpose.xlu0.b32.cont [14/16] %v358, 128
    %393 = vxpose.xlu0.b32.cont [15/16] %v360, 128
    %394 = vxpose.xlu0.b32.end [16/16] %v362, 128
    %v395 = vpop.trf.xlu0
    %v396 = vpop.trf.xlu0
    %v397 = vpop.trf.xlu0
    %v398 = vpop.trf.xlu0
    %v399 = vpop.trf.xlu0
    %v400 = vpop.trf.xlu0
    %v401 = vpop.trf.xlu0
    %v402 = vpop.trf.xlu0
    %v403 = vpop.trf.xlu0
    %v404 = vpop.trf.xlu0
    %v405 = vpop.trf.xlu0
    %v406 = vpop.trf.xlu0
    %v407 = vpop.trf.xlu0
    %v408 = vpop.trf.xlu0
    %v409 = vpop.trf.xlu0
    %v410 = vpop.trf.xlu0
    %411 = vset.pattern.permute.xlu0 65
    %412 = vperm.xlu0 %411, %v210
    %v413 = vpop.permute.xlu0 %412
    %415 = vset.pattern.permute.xlu0 65
    %416 = vperm.xlu0 %415, %v213
    %v417 = vpop.permute.xlu0 %416
    %419 = vset.pattern.permute.xlu0 65
    %420 = vperm.xlu0 %419, %v218
    %v421 = vpop.permute.xlu0 %420
    %423 = vset.pattern.permute.xlu0 65
    %424 = vperm.xlu0 %423, %v221
    %v425 = vpop.permute.xlu0 %424
    %427 = vset.pattern.permute.xlu0 65
    %428 = vperm.xlu0 %427, %v226
    %v429 = vpop.permute.xlu0 %428
    %431 = vset.pattern.permute.xlu0 65
    %432 = vperm.xlu0 %431, %v229
    %v433 = vpop.permute.xlu0 %432
    %435 = vset.pattern.permute.xlu0 65
    %436 = vperm.xlu0 %435, %v234
    %v437 = vpop.permute.xlu0 %436
    %439 = vset.pattern.permute.xlu0 65
    %440 = vperm.xlu0 %439, %v237
    %v441 = vpop.permute.xlu0 %440
    %443 = vset.pattern.permute.xlu0 65
    %444 = vperm.xlu0 %443, %v242
    %v445 = vpop.permute.xlu0 %444
    %447 = vset.pattern.permute.xlu0 65
    %448 = vperm.xlu0 %447, %v245
    %v449 = vpop.permute.xlu0 %448
    %451 = vset.pattern.permute.xlu0 65
    %452 = vperm.xlu0 %451, %v250
    %v453 = vpop.permute.xlu0 %452
    %455 = vset.pattern.permute.xlu0 65
    %456 = vperm.xlu0 %455, %v253
    %v457 = vpop.permute.xlu0 %456
    %459 = vset.pattern.permute.xlu0 65
    %460 = vperm.xlu0 %459, %v258
    %v461 = vpop.permute.xlu0 %460
    %463 = vset.pattern.permute.xlu0 65
    %464 = vperm.xlu0 %463, %v261
    %v465 = vpop.permute.xlu0 %464
    %467 = vset.pattern.permute.xlu0 65
    %468 = vperm.xlu0 %467, %v266
    %v469 = vpop.permute.xlu0 %468
    %471 = vset.pattern.permute.xlu0 65
    %472 = vperm.xlu0 %471, %v269
    %v473 = vpop.permute.xlu0 %472
    %v475 = vlaneseq
    %v476 = vshrl.u32 %v475, 7
    %v477 = vsub.s32 0, %v476
    %v478 = vrot.slane %v395, %v477
    %v479 = vadd.f32 %v413, %v478
    %v480 = vadd.f32 %v417, %v478
    %v481 = vadd.f32 %v421, %v478
    %v482 = vadd.f32 %v425, %v478
    %v483 = vadd.f32 %v429, %v478
    %v484 = vadd.f32 %v433, %v478
    %v485 = vadd.f32 %v437, %v478
    %v486 = vadd.f32 %v441, %v478
    %v487 = vadd.f32 %v445, %v478
    %v488 = vadd.f32 %v449, %v478
    %v489 = vadd.f32 %v453, %v478
    %v490 = vadd.f32 %v457, %v478
    %v491 = vadd.f32 %v461, %v478
    %v492 = vadd.f32 %v465, %v478
    %v493 = vadd.f32 %v469, %v478
    %v494 = vadd.f32 %v473, %v478
    %vm495 = vcmp.gt.f32.partialorder %v479, 0.0
    %vm496 = vcmp.gt.f32.partialorder %v480, 0.0
    %vm497 = vcmp.gt.f32.partialorder %v481, 0.0
    %vm498 = vcmp.gt.f32.partialorder %v482, 0.0
    %vm499 = vcmp.gt.f32.partialorder %v483, 0.0
    %vm500 = vcmp.gt.f32.partialorder %v484, 0.0
    %vm501 = vcmp.gt.f32.partialorder %v485, 0.0
    %vm502 = vcmp.gt.f32.partialorder %v486, 0.0
    %vm503 = vcmp.gt.f32.partialorder %v487, 0.0
    %vm504 = vcmp.gt.f32.partialorder %v488, 0.0
    %vm505 = vcmp.gt.f32.partialorder %v489, 0.0
    %vm506 = vcmp.gt.f32.partialorder %v490, 0.0
    %vm507 = vcmp.gt.f32.partialorder %v491, 0.0
    %vm508 = vcmp.gt.f32.partialorder %v492, 0.0
    %vm509 = vcmp.gt.f32.partialorder %v493, 0.0
    %vm510 = vcmp.gt.f32.partialorder %v494, 0.0
    %v511 = vmul.f32 %v479, 0.2
    %v512 = vmul.f32 %v480, 0.2
    %v513 = vmul.f32 %v481, 0.2
    %v514 = vmul.f32 %v482, 0.2
    %v515 = vmul.f32 %v483, 0.2
    %v516 = vmul.f32 %v484, 0.2
    %v517 = vmul.f32 %v485, 0.2
    %v518 = vmul.f32 %v486, 0.2
    %v519 = vmul.f32 %v487, 0.2
    %v520 = vmul.f32 %v488, 0.2
    %v521 = vmul.f32 %v489, 0.2
    %v522 = vmul.f32 %v490, 0.2
    %v523 = vmul.f32 %v491, 0.2
    %v524 = vmul.f32 %v492, 0.2
    %v525 = vmul.f32 %v493, 0.2
    %v526 = vmul.f32 %v494, 0.2
    %v527 = vsel %vm495, %v479, %v511
    %v528 = vsel %vm496, %v480, %v512
    %v529 = vsel %vm497, %v481, %v513
    %v530 = vsel %vm498, %v482, %v514
    %v531 = vsel %vm499, %v483, %v515
    %v532 = vsel %vm500, %v484, %v516
    %v533 = vsel %vm501, %v485, %v517
    %v534 = vsel %vm502, %v486, %v518
    %v535 = vsel %vm503, %v487, %v519
    %v536 = vsel %vm504, %v488, %v520
    %v537 = vsel %vm505, %v489, %v521
    %v538 = vsel %vm506, %v490, %v522
    %v539 = vsel %vm507, %v491, %v523
    %v540 = vsel %vm508, %v492, %v524
    %v541 = vsel %vm509, %v493, %v525
    %v542 = vsel %vm510, %v494, %v526
    %v543 = vsel %vm296, 65537, 0
    %v544 = vsel %vm297, 65537, 0
    %v545 = vsel %vm298, 65537, 0
    %v546 = vsel %vm299, 65537, 0
    %v547 = vsel %vm300, 65537, 0
    %v548 = vsel %vm301, 65537, 0
    %v549 = vsel %vm302, 65537, 0
    %v550 = vsel %vm303, 65537, 0
    %v551 = vsel %vm304, 65537, 0
    %v552 = vsel %vm305, 65537, 0
    %v553 = vsel %vm306, 65537, 0
    %v554 = vsel %vm307, 65537, 0
    %v555 = vsel %vm308, 65537, 0
    %v556 = vsel %vm309, 65537, 0
    %v557 = vsel %vm310, 65537, 0
    %v558 = vsel %vm311, 65537, 0
    %v559 = vunpack.c.l.b16 %v543
    %v560 = vunpack.c.l.b16 %v544
    %v561 = vunpack.c.l.b16 %v545
    %v562 = vunpack.c.l.b16 %v546
    %v563 = vunpack.c.l.b16 %v547
    %v564 = vunpack.c.l.b16 %v548
    %v565 = vunpack.c.l.b16 %v549
    %v566 = vunpack.c.l.b16 %v550
    %v567 = vunpack.c.l.b16 %v551
    %v568 = vunpack.c.l.b16 %v552
    %v569 = vunpack.c.l.b16 %v553
    %v570 = vunpack.c.l.b16 %v554
    %v571 = vunpack.c.l.b16 %v555
    %v572 = vunpack.c.l.b16 %v556
    %v573 = vunpack.c.l.b16 %v557
    %v574 = vunpack.c.l.b16 %v558
    %vm575 = vcmp.ne.s32.totalorder %v559, 0
    %vm576 = vcmp.ne.s32.totalorder %v560, 0
    %vm577 = vcmp.ne.s32.totalorder %v561, 0
    %vm578 = vcmp.ne.s32.totalorder %v562, 0
    %vm579 = vcmp.ne.s32.totalorder %v563, 0
    %vm580 = vcmp.ne.s32.totalorder %v564, 0
    %vm581 = vcmp.ne.s32.totalorder %v565, 0
    %vm582 = vcmp.ne.s32.totalorder %v566, 0
    %vm583 = vcmp.ne.s32.totalorder %v567, 0
    %vm584 = vcmp.ne.s32.totalorder %v568, 0
    %vm585 = vcmp.ne.s32.totalorder %v569, 0
    %vm586 = vcmp.ne.s32.totalorder %v570, 0
    %vm587 = vcmp.ne.s32.totalorder %v571, 0
    %vm588 = vcmp.ne.s32.totalorder %v572, 0
    %vm589 = vcmp.ne.s32.totalorder %v573, 0
    %vm590 = vcmp.ne.s32.totalorder %v574, 0
    %v591 = vsel %vm575, %v527, -1e+09
    %v592 = vsel %vm576, %v528, -1e+09
    %v593 = vsel %vm577, %v529, -1e+09
    %v594 = vsel %vm578, %v530, -1e+09
    %v595 = vsel %vm579, %v531, -1e+09
    %v596 = vsel %vm580, %v532, -1e+09
    %v597 = vsel %vm581, %v533, -1e+09
    %v598 = vsel %vm582, %v534, -1e+09
    %v599 = vsel %vm583, %v535, -1e+09
    %v600 = vsel %vm584, %v536, -1e+09
    %v601 = vsel %vm585, %v537, -1e+09
    %v602 = vsel %vm586, %v538, -1e+09
    %v603 = vsel %vm587, %v539, -1e+09
    %v604 = vsel %vm588, %v540, -1e+09
    %v605 = vsel %vm589, %v541, -1e+09
    %v606 = vsel %vm590, %v542, -1e+09
    %607 = vmax.xlane.f32.xlu0 %v591
    %v608 = vpop.xlane.xlu0 %607
    %609 = vmax.xlane.f32.xlu0 %v592
    %v610 = vpop.xlane.xlu0 %609
    %611 = vmax.xlane.f32.xlu0 %v593
    %v612 = vpop.xlane.xlu0 %611
    %613 = vmax.xlane.f32.xlu0 %v594
    %v614 = vpop.xlane.xlu0 %613
    %615 = vmax.xlane.f32.xlu0 %v595
    %v616 = vpop.xlane.xlu0 %615
    %617 = vmax.xlane.f32.xlu0 %v596
    %v618 = vpop.xlane.xlu0 %617
    %619 = vmax.xlane.f32.xlu0 %v597
    %v620 = vpop.xlane.xlu0 %619
    %621 = vmax.xlane.f32.xlu0 %v598
    %v622 = vpop.xlane.xlu0 %621
    %623 = vmax.xlane.f32.xlu0 %v599
    %v624 = vpop.xlane.xlu0 %623
    %625 = vmax.xlane.f32.xlu0 %v600
    %v626 = vpop.xlane.xlu0 %625
    %627 = vmax.xlane.f32.xlu0 %v601
    %v628 = vpop.xlane.xlu0 %627
    %629 = vmax.xlane.f32.xlu0 %v602
    %v630 = vpop.xlane.xlu0 %629
    %631 = vmax.xlane.f32.xlu0 %v603
    %v632 = vpop.xlane.xlu0 %631
    %633 = vmax.xlane.f32.xlu0 %v604
    %v634 = vpop.xlane.xlu0 %633
    %635 = vmax.xlane.f32.xlu0 %v605
    %v636 = vpop.xlane.xlu0 %635
    %637 = vmax.xlane.f32.xlu0 %v606
    %v638 = vpop.xlane.xlu0 %637
    %v639 = vsub.f32 %v591, %v608
    %v640 = vsub.f32 %v592, %v610
    %v641 = vsub.f32 %v593, %v612
    %v642 = vsub.f32 %v594, %v614
    %v643 = vsub.f32 %v595, %v616
    %v644 = vsub.f32 %v596, %v618
    %v645 = vsub.f32 %v597, %v620
    %v646 = vsub.f32 %v598, %v622
    %v647 = vsub.f32 %v599, %v624
    %v648 = vsub.f32 %v600, %v626
    %v649 = vsub.f32 %v601, %v628
    %v650 = vsub.f32 %v602, %v630
    %v651 = vsub.f32 %v603, %v632
    %v652 = vsub.f32 %v604, %v634
    %v653 = vsub.f32 %v605, %v636
    %v654 = vsub.f32 %v606, %v638
    %v655 = vmul.f32 %v639, 1.442695
    %v656 = vpow.pop %v655
    %v657 = vmul.f32 %v640, 1.442695
    %v658 = vpow.pop %v657
    %v659 = vmul.f32 %v641, 1.442695
    %v660 = vpow.pop %v659
    %v661 = vmul.f32 %v642, 1.442695
    %v662 = vpow.pop %v661
    %v663 = vmul.f32 %v643, 1.442695
    %v664 = vpow.pop %v663
    %v665 = vmul.f32 %v644, 1.442695
    %v666 = vpow.pop %v665
    %v667 = vmul.f32 %v645, 1.442695
    %v668 = vpow.pop %v667
    %v669 = vmul.f32 %v646, 1.442695
    %v670 = vpow.pop %v669
    %v671 = vmul.f32 %v647, 1.442695
    %v672 = vpow.pop %v671
    %v673 = vmul.f32 %v648, 1.442695
    %v674 = vpow.pop %v673
    %v675 = vmul.f32 %v649, 1.442695
    %v676 = vpow.pop %v675
    %v677 = vmul.f32 %v650, 1.442695
    %v678 = vpow.pop %v677
    %v679 = vmul.f32 %v651, 1.442695
    %v680 = vpow.pop %v679
    %v681 = vmul.f32 %v652, 1.442695
    %v682 = vpow.pop %v681
    %v683 = vmul.f32 %v653, 1.442695
    %v684 = vpow.pop %v683
    %v685 = vmul.f32 %v654, 1.442695
    %v686 = vpow.pop %v685
    %v687 = vsel %vm575, %v656, 0.0
    %v688 = vsel %vm576, %v658, 0.0
    %v689 = vsel %vm577, %v660, 0.0
    %v690 = vsel %vm578, %v662, 0.0
    %v691 = vsel %vm579, %v664, 0.0
    %v692 = vsel %vm580, %v666, 0.0
    %v693 = vsel %vm581, %v668, 0.0
    %v694 = vsel %vm582, %v670, 0.0
    %v695 = vsel %vm583, %v672, 0.0
    %v696 = vsel %vm584, %v674, 0.0
    %v697 = vsel %vm585, %v676, 0.0
    %v698 = vsel %vm586, %v678, 0.0
    %v699 = vsel %vm587, %v680, 0.0
    %v700 = vsel %vm588, %v682, 0.0
    %v701 = vsel %vm589, %v684, 0.0
    %v702 = vsel %vm590, %v686, 0.0
    %703 = vadd.xlane.f32.xlu0 %v687
    %v704 = vpop.xlane.xlu0 %703
    %705 = vadd.xlane.f32.xlu0 %v688
    %v706 = vpop.xlane.xlu0 %705
    %707 = vadd.xlane.f32.xlu0 %v689
    %v708 = vpop.xlane.xlu0 %707
    %709 = vadd.xlane.f32.xlu0 %v690
    %v710 = vpop.xlane.xlu0 %709
    %711 = vadd.xlane.f32.xlu0 %v691
    %v712 = vpop.xlane.xlu0 %711
    %713 = vadd.xlane.f32.xlu0 %v692
    %v714 = vpop.xlane.xlu0 %713
    %715 = vadd.xlane.f32.xlu0 %v693
    %v716 = vpop.xlane.xlu0 %715
    %717 = vadd.xlane.f32.xlu0 %v694
    %v718 = vpop.xlane.xlu0 %717
    %719 = vadd.xlane.f32.xlu0 %v695
    %v720 = vpop.xlane.xlu0 %719
    %721 = vadd.xlane.f32.xlu0 %v696
    %v722 = vpop.xlane.xlu0 %721
    %723 = vadd.xlane.f32.xlu0 %v697
    %v724 = vpop.xlane.xlu0 %723
    %725 = vadd.xlane.f32.xlu0 %v698
    %v726 = vpop.xlane.xlu0 %725
    %727 = vadd.xlane.f32.xlu0 %v699
    %v728 = vpop.xlane.xlu0 %727
    %729 = vadd.xlane.f32.xlu0 %v700
    %v730 = vpop.xlane.xlu0 %729
    %731 = vadd.xlane.f32.xlu0 %v701
    %v732 = vpop.xlane.xlu0 %731
    %733 = vadd.xlane.f32.xlu0 %v702
    %v734 = vpop.xlane.xlu0 %733
    %v735 = vmax.f32 %v704, 1e-12
    %v736 = vmax.f32 %v706, 1e-12
    %v737 = vmax.f32 %v708, 1e-12
    %v738 = vmax.f32 %v710, 1e-12
    %v739 = vmax.f32 %v712, 1e-12
    %v740 = vmax.f32 %v714, 1e-12
    %v741 = vmax.f32 %v716, 1e-12
    %v742 = vmax.f32 %v718, 1e-12
    %v743 = vmax.f32 %v720, 1e-12
    %v744 = vmax.f32 %v722, 1e-12
    %v745 = vmax.f32 %v724, 1e-12
    %v746 = vmax.f32 %v726, 1e-12
    %v747 = vmax.f32 %v728, 1e-12
    %v748 = vmax.f32 %v730, 1e-12
    %v749 = vmax.f32 %v732, 1e-12
    %v750 = vmax.f32 %v734, 1e-12
    %v751 = vrcp.pop %v735
    %v752 = vrcp.pop %v736
    %v753 = vrcp.pop %v737
    %v754 = vrcp.pop %v738
    %v755 = vrcp.pop %v739
    %v756 = vrcp.pop %v740
    %v757 = vrcp.pop %v741
    %v758 = vrcp.pop %v742
    %v759 = vrcp.pop %v743
    %v760 = vrcp.pop %v744
    %v761 = vrcp.pop %v745
    %v762 = vrcp.pop %v746
    %v763 = vrcp.pop %v747
    %v764 = vrcp.pop %v748
    %v765 = vrcp.pop %v749
    %v766 = vrcp.pop %v750
    %v767 = vpack.c.bf16 %v688, %v687
    %v768 = vpack.c.bf16 %v690, %v689
    %v769 = vpack.c.bf16 %v692, %v691
    %v770 = vpack.c.bf16 %v694, %v693
    %v771 = vpack.c.bf16 %v696, %v695
    %v772 = vpack.c.bf16 %v698, %v697
    %v773 = vpack.c.bf16 %v700, %v699
    %v774 = vpack.c.bf16 %v702, %v701
    %775 = vmatprep.subr.bf16.mxu0 0
    %776 = vmatpush1.bf16.msra.mxu0 %v279
    %777 = vmatprep.subr.bf16.mxu0 0
    %778 = vmatpush1.bf16.msra.mxu0 %v278
    %779 = vmatprep.subr.bf16.mxu0 0
    %780 = vmatpush1.bf16.msra.mxu0 %v277
    %781 = vmatprep.subr.bf16.mxu0 0
    %782 = vmatpush1.bf16.msra.mxu0 %v276
    %783 = vmatprep.subr.bf16.mxu0 0
    %784 = vmatpush1.bf16.msra.mxu0 %v275
    %785 = vmatprep.subr.bf16.mxu0 0
    %786 = vmatpush1.bf16.msra.mxu0 %v274
    %787 = vmatprep.subr.bf16.mxu0 0
    %788 = vmatpush1.bf16.msra.mxu0 %v273
    %789 = vmatprep.subr.bf16.mxu0 0
    %790 = vmatpush1.bf16.msra.mxu0 %v272
    %791 = vmatprep.subr.bf16.mxu0 0
    %792 = vmatpush2.bf16.msra.mxu0 0
    %793 = vmatprep.subr.bf16.mxu0 0
    %794 = vmatpush2.bf16.msra.mxu0 0
    %795 = vmatprep.subr.bf16.mxu0 0
    %796 = vmatpush2.bf16.msra.mxu0 0
    %797 = vmatprep.subr.bf16.mxu0 0
    %798 = vmatpush2.bf16.msra.mxu0 0
    %799 = vmatprep.subr.bf16.mxu0 0
    %800 = vmatpush2.bf16.msra.mxu0 0
    %801 = vmatprep.subr.bf16.mxu0 0
    %802 = vmatpush2.bf16.msra.mxu0 0
    %803 = vmatprep.subr.bf16.mxu0 0
    %804 = vmatpush2.bf16.msra.mxu0 0
    %805 = vmatprep.subr.bf16.mxu0 0
    %806 = vmatpush2.bf16.msra.mxu0 0
    %807 = vmatprep.mubr.bf16.mxu0 0
    %808 = vmatmul.mubr.bf16.gmra.mxu0 %v767
    %v809 = vpop.f32.mrf.mxu0
    %v810 = vadd.f32 0.0, %v809
    %v811 = vpop.f32.mrf.mxu0
    %v812 = vpop.f32.mrf.mxu0
    %v813 = vadd.f32 0.0, %v812
    %v814 = vpop.f32.mrf.mxu0
    %815 = vmatprep.mubr.bf16.mxu0 0
    %816 = vmatmul.mubr.bf16.gmra.mxu0 %v768
    %v817 = vpop.f32.mrf.mxu0
    %v818 = vadd.f32 0.0, %v817
    %v819 = vpop.f32.mrf.mxu0
    %v820 = vpop.f32.mrf.mxu0
    %v821 = vadd.f32 0.0, %v820
    %v822 = vpop.f32.mrf.mxu0
    %823 = vmatprep.mubr.bf16.mxu0 0
    %824 = vmatmul.mubr.bf16.gmra.mxu0 %v769
    %v825 = vpop.f32.mrf.mxu0
    %v826 = vadd.f32 0.0, %v825
    %v827 = vpop.f32.mrf.mxu0
    %v828 = vpop.f32.mrf.mxu0
    %v829 = vadd.f32 0.0, %v828
    %v830 = vpop.f32.mrf.mxu0
    %831 = vmatprep.mubr.bf16.mxu0 0
    %832 = vmatmul.mubr.bf16.gmra.mxu0 %v770
    %v833 = vpop.f32.mrf.mxu0
    %v834 = vadd.f32 0.0, %v833
    %v835 = vpop.f32.mrf.mxu0
    %v836 = vpop.f32.mrf.mxu0
    %v837 = vadd.f32 0.0, %v836
    %v838 = vpop.f32.mrf.mxu0
    %839 = vmatprep.mubr.bf16.mxu0 0
    %840 = vmatmul.mubr.bf16.gmra.mxu0 %v771
    %v841 = vpop.f32.mrf.mxu0
    %v842 = vadd.f32 0.0, %v841
    %v843 = vpop.f32.mrf.mxu0
    %v844 = vpop.f32.mrf.mxu0
    %v845 = vadd.f32 0.0, %v844
    %v846 = vpop.f32.mrf.mxu0
    %847 = vmatprep.mubr.bf16.mxu0 0
    %848 = vmatmul.mubr.bf16.gmra.mxu0 %v772
    %v849 = vpop.f32.mrf.mxu0
    %v850 = vadd.f32 0.0, %v849
    %v851 = vpop.f32.mrf.mxu0
    %v852 = vpop.f32.mrf.mxu0
    %v853 = vadd.f32 0.0, %v852
    %v854 = vpop.f32.mrf.mxu0
    %855 = vmatprep.mubr.bf16.mxu0 0
    %856 = vmatmul.mubr.bf16.gmra.mxu0 %v773
    %v857 = vpop.f32.mrf.mxu0
    %v858 = vadd.f32 0.0, %v857
    %v859 = vpop.f32.mrf.mxu0
    %v860 = vpop.f32.mrf.mxu0
    %v861 = vadd.f32 0.0, %v860
    %v862 = vpop.f32.mrf.mxu0
    %863 = vmatprep.mubr.bf16.mxu0 0
    %864 = vmatmul.mubr.bf16.gmra.mxu0 %v774
    %v865 = vpop.f32.mrf.mxu0
    %v866 = vadd.f32 0.0, %v865
    %v867 = vpop.f32.mrf.mxu0
    %v868 = vpop.f32.mrf.mxu0
    %v869 = vadd.f32 0.0, %v868
    %v870 = vpop.f32.mrf.mxu0
    %871 = vdwg.mxu0
    %v872 = vmul.f32 %v810, %v751
    %v873 = vmul.f32 %v813, %v752
    %v874 = vmul.f32 %v818, %v753
    %v875 = vmul.f32 %v821, %v754
    %v876 = vmul.f32 %v826, %v755
    %v877 = vmul.f32 %v829, %v756
    %v878 = vmul.f32 %v834, %v757
    %v879 = vmul.f32 %v837, %v758
    %v880 = vmul.f32 %v842, %v759
    %v881 = vmul.f32 %v845, %v760
    %v882 = vmul.f32 %v850, %v761
    %v883 = vmul.f32 %v853, %v762
    %v884 = vmul.f32 %v858, %v763
    %v885 = vmul.f32 %v861, %v764
    %v886 = vmul.f32 %v866, %v765
    %v887 = vmul.f32 %v869, %v766
    %v888 = vlaneseq
    %v889 = vshrl.u32 %v888, 7
    %v890 = vsub.s32 0, %v889
    %v891 = vrot.slane %v312, %v890
    %v892 = vadd.f32 %v872, %v891
    %v893 = vadd.f32 %v873, %v891
    %v894 = vadd.f32 %v874, %v891
    %v895 = vadd.f32 %v875, %v891
    %v896 = vadd.f32 %v876, %v891
    %v897 = vadd.f32 %v877, %v891
    %v898 = vadd.f32 %v878, %v891
    %v899 = vadd.f32 %v879, %v891
    %v900 = vadd.f32 %v880, %v891
    %v901 = vadd.f32 %v881, %v891
    %v902 = vadd.f32 %v882, %v891
    %v903 = vadd.f32 %v883, %v891
    %v904 = vadd.f32 %v884, %v891
    %v905 = vadd.f32 %v885, %v891
    %v906 = vadd.f32 %v886, %v891
    %v907 = vadd.f32 %v887, %v891
    %v908 = vmax.f32 %v892, 0.0
    %v909 = vmax.f32 %v893, 0.0
    %v910 = vmax.f32 %v894, 0.0
    %v911 = vmax.f32 %v895, 0.0
    %v912 = vmax.f32 %v896, 0.0
    %v913 = vmax.f32 %v897, 0.0
    %v914 = vmax.f32 %v898, 0.0
    %v915 = vmax.f32 %v899, 0.0
    %v916 = vmax.f32 %v900, 0.0
    %v917 = vmax.f32 %v901, 0.0
    %v918 = vmax.f32 %v902, 0.0
    %v919 = vmax.f32 %v903, 0.0
    %v920 = vmax.f32 %v904, 0.0
    %v921 = vmax.f32 %v905, 0.0
    %v922 = vmax.f32 %v906, 0.0
    %v923 = vmax.f32 %v907, 0.0
    %v924 = vlaneseq
    %v925 = vshrl.u32 %v924, 7
    %v926 = vsub.s32 0, %v925
    %v927 = vrot.slane %v313, %v926
    %v928 = vmul.f32 %v908, %v927
    %v929 = vmul.f32 %v909, %v927
    %v930 = vmul.f32 %v910, %v927
    %v931 = vmul.f32 %v911, %v927
    %v932 = vmul.f32 %v912, %v927
    %v933 = vmul.f32 %v913, %v927
    %v934 = vmul.f32 %v914, %v927
    %v935 = vmul.f32 %v915, %v927
    %v936 = vmul.f32 %v916, %v927
    %v937 = vmul.f32 %v917, %v927
    %v938 = vmul.f32 %v918, %v927
    %v939 = vmul.f32 %v919, %v927
    %v940 = vmul.f32 %v920, %v927
    %v941 = vmul.f32 %v921, %v927
    %v942 = vmul.f32 %v922, %v927
    %v943 = vmul.f32 %v923, %v927
    %v944 = vsel %vm150, %v928, 0.0
    %945 = vadd.xlane.f32.xlu0 %v944
    %v946 = vpop.xlane.xlu0 %945
    %v947 = vsel %vm150, %v929, 0.0
    %948 = vadd.xlane.f32.xlu0 %v947
    %v949 = vpop.xlane.xlu0 %948
    %v950 = vsel %vm150, %v930, 0.0
    %951 = vadd.xlane.f32.xlu0 %v950
    %v952 = vpop.xlane.xlu0 %951
    %v953 = vsel %vm150, %v931, 0.0
    %954 = vadd.xlane.f32.xlu0 %v953
    %v955 = vpop.xlane.xlu0 %954
    %v956 = vsel %vm150, %v932, 0.0
    %957 = vadd.xlane.f32.xlu0 %v956
    %v958 = vpop.xlane.xlu0 %957
    %v959 = vsel %vm150, %v933, 0.0
    %960 = vadd.xlane.f32.xlu0 %v959
    %v961 = vpop.xlane.xlu0 %960
    %v962 = vsel %vm150, %v934, 0.0
    %963 = vadd.xlane.f32.xlu0 %v962
    %v964 = vpop.xlane.xlu0 %963
    %v965 = vsel %vm150, %v935, 0.0
    %966 = vadd.xlane.f32.xlu0 %v965
    %v967 = vpop.xlane.xlu0 %966
    %v968 = vsel %vm150, %v936, 0.0
    %969 = vadd.xlane.f32.xlu0 %v968
    %v970 = vpop.xlane.xlu0 %969
    %v971 = vsel %vm150, %v937, 0.0
    %972 = vadd.xlane.f32.xlu0 %v971
    %v973 = vpop.xlane.xlu0 %972
    %v974 = vsel %vm150, %v938, 0.0
    %975 = vadd.xlane.f32.xlu0 %v974
    %v976 = vpop.xlane.xlu0 %975
    %v977 = vsel %vm150, %v939, 0.0
    %978 = vadd.xlane.f32.xlu0 %v977
    %v979 = vpop.xlane.xlu0 %978
    %v980 = vsel %vm150, %v940, 0.0
    %981 = vadd.xlane.f32.xlu0 %v980
    %v982 = vpop.xlane.xlu0 %981
    %v983 = vsel %vm150, %v941, 0.0
    %984 = vadd.xlane.f32.xlu0 %v983
    %v985 = vpop.xlane.xlu0 %984
    %v986 = vsel %vm150, %v942, 0.0
    %987 = vadd.xlane.f32.xlu0 %v986
    %v988 = vpop.xlane.xlu0 %987
    %v989 = vsel %vm150, %v943, 0.0
    %990 = vadd.xlane.f32.xlu0 %v989
    %v991 = vpop.xlane.xlu0 %990
    %992 = vxpose.xlu0.b32.start [1/16] %v946, 128
    %993 = vxpose.xlu0.b32.cont [2/16] %v949, 128
    %994 = vxpose.xlu0.b32.cont [3/16] %v952, 128
    %995 = vxpose.xlu0.b32.cont [4/16] %v955, 128
    %996 = vxpose.xlu0.b32.cont [5/16] %v958, 128
    %997 = vxpose.xlu0.b32.cont [6/16] %v961, 128
    %998 = vxpose.xlu0.b32.cont [7/16] %v964, 128
    %999 = vxpose.xlu0.b32.cont [8/16] %v967, 128
    %1000 = vxpose.xlu0.b32.cont [9/16] %v970, 128
    %1001 = vxpose.xlu0.b32.cont [10/16] %v973, 128
    %1002 = vxpose.xlu0.b32.cont [11/16] %v976, 128
    %1003 = vxpose.xlu0.b32.cont [12/16] %v979, 128
    %1004 = vxpose.xlu0.b32.cont [13/16] %v982, 128
    %1005 = vxpose.xlu0.b32.cont [14/16] %v985, 128
    %1006 = vxpose.xlu0.b32.cont [15/16] %v988, 128
    %1007 = vxpose.xlu0.b32.end [16/16] %v991, 128
    %v1008 = vpop.trf.xlu0
    %v1009 = vpop.trf.xlu0
    %v1010 = vpop.trf.xlu0
    %v1011 = vpop.trf.xlu0
    %v1012 = vpop.trf.xlu0
    %v1013 = vpop.trf.xlu0
    %v1014 = vpop.trf.xlu0
    %v1015 = vpop.trf.xlu0
    %v1016 = vpop.trf.xlu0
    %v1017 = vpop.trf.xlu0
    %v1018 = vpop.trf.xlu0
    %v1019 = vpop.trf.xlu0
    %v1020 = vpop.trf.xlu0
    %v1021 = vpop.trf.xlu0
    %v1022 = vpop.trf.xlu0
    %v1023 = vpop.trf.xlu0
    %v1024 = vlaneseq
    %v1025 = vshrl.u32 %v1024, 7
    %v1026 = vsub.s32 0, %v1025
    %v1027 = vrot.slane %v314, %v1026
    %v1028 = vmul.f32 %v1027, %v946
    %v1029 = vmul.f32 %v1027, %v949
    %v1030 = vmul.f32 %v1027, %v952
    %v1031 = vmul.f32 %v1027, %v955
    %v1032 = vmul.f32 %v1027, %v958
    %v1033 = vmul.f32 %v1027, %v961
    %v1034 = vmul.f32 %v1027, %v964
    %v1035 = vmul.f32 %v1027, %v967
    %v1036 = vmul.f32 %v1027, %v970
    %v1037 = vmul.f32 %v1027, %v973
    %v1038 = vmul.f32 %v1027, %v976
    %v1039 = vmul.f32 %v1027, %v979
    %v1040 = vmul.f32 %v1027, %v982
    %v1041 = vmul.f32 %v1027, %v985
    %v1042 = vmul.f32 %v1027, %v988
    %v1043 = vmul.f32 %v1027, %v991
    %1045 = vset.pattern.permute.xlu0 0
    %1046 = vperm.xlu0 %1045, %v314
    %v1047 = vpop.permute.xlu0 %1046
    %v1049 = vmul.f32 %v1047, %v1008
    %1051 = vset.pattern.permute.xlu0 1
    %1052 = vperm.xlu0 %1051, %v1028
    %v1053 = vpop.permute.xlu0 %1052
    %1056 = vset.pattern.permute.xlu0 1
    %1057 = vperm.xlu0 %1056, %v1029
    %v1058 = vpop.permute.xlu0 %1057
    %1061 = vset.pattern.permute.xlu0 1
    %1062 = vperm.xlu0 %1061, %v1030
    %v1063 = vpop.permute.xlu0 %1062
    %1066 = vset.pattern.permute.xlu0 1
    %1067 = vperm.xlu0 %1066, %v1031
    %v1068 = vpop.permute.xlu0 %1067
    %1071 = vset.pattern.permute.xlu0 1
    %1072 = vperm.xlu0 %1071, %v1032
    %v1073 = vpop.permute.xlu0 %1072
    %1076 = vset.pattern.permute.xlu0 1
    %1077 = vperm.xlu0 %1076, %v1033
    %v1078 = vpop.permute.xlu0 %1077
    %1081 = vset.pattern.permute.xlu0 1
    %1082 = vperm.xlu0 %1081, %v1034
    %v1083 = vpop.permute.xlu0 %1082
    %1086 = vset.pattern.permute.xlu0 1
    %1087 = vperm.xlu0 %1086, %v1035
    %v1088 = vpop.permute.xlu0 %1087
    %1091 = vset.pattern.permute.xlu0 1
    %1092 = vperm.xlu0 %1091, %v1036
    %v1093 = vpop.permute.xlu0 %1092
    %1096 = vset.pattern.permute.xlu0 1
    %1097 = vperm.xlu0 %1096, %v1037
    %v1098 = vpop.permute.xlu0 %1097
    %1101 = vset.pattern.permute.xlu0 1
    %1102 = vperm.xlu0 %1101, %v1038
    %v1103 = vpop.permute.xlu0 %1102
    %1106 = vset.pattern.permute.xlu0 1
    %1107 = vperm.xlu0 %1106, %v1039
    %v1108 = vpop.permute.xlu0 %1107
    %1111 = vset.pattern.permute.xlu0 1
    %1112 = vperm.xlu0 %1111, %v1040
    %v1113 = vpop.permute.xlu0 %1112
    %1116 = vset.pattern.permute.xlu0 1
    %1117 = vperm.xlu0 %1116, %v1041
    %v1118 = vpop.permute.xlu0 %1117
    %1121 = vset.pattern.permute.xlu0 1
    %1122 = vperm.xlu0 %1121, %v1042
    %v1123 = vpop.permute.xlu0 %1122
    %1126 = vset.pattern.permute.xlu0 1
    %1127 = vperm.xlu0 %1126, %v1043
    %v1128 = vpop.permute.xlu0 %1127
    %v1130 = vlaneseq
    %v1131 = vshrl.u32 %v1130, 7
    %v1132 = vsub.s32 0, %v1131
    %v1133 = vrot.slane %v1049, %v1132
    %v1134 = vadd.f32 %v1053, %v1133
    %v1135 = vadd.f32 %v1058, %v1133
    %v1136 = vadd.f32 %v1063, %v1133
    %v1137 = vadd.f32 %v1068, %v1133
    %v1138 = vadd.f32 %v1073, %v1133
    %v1139 = vadd.f32 %v1078, %v1133
    %v1140 = vadd.f32 %v1083, %v1133
    %v1141 = vadd.f32 %v1088, %v1133
    %v1142 = vadd.f32 %v1093, %v1133
    %v1143 = vadd.f32 %v1098, %v1133
    %v1144 = vadd.f32 %v1103, %v1133
    %v1145 = vadd.f32 %v1108, %v1133
    %v1146 = vadd.f32 %v1113, %v1133
    %v1147 = vadd.f32 %v1118, %v1133
    %v1148 = vadd.f32 %v1123, %v1133
    %v1149 = vadd.f32 %v1128, %v1133
    %vm1150 = vcmp.gt.f32.partialorder %v1134, 0.0
    %vm1151 = vcmp.gt.f32.partialorder %v1135, 0.0
    %vm1152 = vcmp.gt.f32.partialorder %v1136, 0.0
    %vm1153 = vcmp.gt.f32.partialorder %v1137, 0.0
    %vm1154 = vcmp.gt.f32.partialorder %v1138, 0.0
    %vm1155 = vcmp.gt.f32.partialorder %v1139, 0.0
    %vm1156 = vcmp.gt.f32.partialorder %v1140, 0.0
    %vm1157 = vcmp.gt.f32.partialorder %v1141, 0.0
    %vm1158 = vcmp.gt.f32.partialorder %v1142, 0.0
    %vm1159 = vcmp.gt.f32.partialorder %v1143, 0.0
    %vm1160 = vcmp.gt.f32.partialorder %v1144, 0.0
    %vm1161 = vcmp.gt.f32.partialorder %v1145, 0.0
    %vm1162 = vcmp.gt.f32.partialorder %v1146, 0.0
    %vm1163 = vcmp.gt.f32.partialorder %v1147, 0.0
    %vm1164 = vcmp.gt.f32.partialorder %v1148, 0.0
    %vm1165 = vcmp.gt.f32.partialorder %v1149, 0.0
    %v1166 = vmul.f32 %v1134, 0.2
    %v1167 = vmul.f32 %v1135, 0.2
    %v1168 = vmul.f32 %v1136, 0.2
    %v1169 = vmul.f32 %v1137, 0.2
    %v1170 = vmul.f32 %v1138, 0.2
    %v1171 = vmul.f32 %v1139, 0.2
    %v1172 = vmul.f32 %v1140, 0.2
    %v1173 = vmul.f32 %v1141, 0.2
    %v1174 = vmul.f32 %v1142, 0.2
    %v1175 = vmul.f32 %v1143, 0.2
    %v1176 = vmul.f32 %v1144, 0.2
    %v1177 = vmul.f32 %v1145, 0.2
    %v1178 = vmul.f32 %v1146, 0.2
    %v1179 = vmul.f32 %v1147, 0.2
    %v1180 = vmul.f32 %v1148, 0.2
    %v1181 = vmul.f32 %v1149, 0.2
    %v1182 = vsel %vm1150, %v1134, %v1166
    %v1183 = vsel %vm1151, %v1135, %v1167
    %v1184 = vsel %vm1152, %v1136, %v1168
    %v1185 = vsel %vm1153, %v1137, %v1169
    %v1186 = vsel %vm1154, %v1138, %v1170
    %v1187 = vsel %vm1155, %v1139, %v1171
    %v1188 = vsel %vm1156, %v1140, %v1172
    %v1189 = vsel %vm1157, %v1141, %v1173
    %v1190 = vsel %vm1158, %v1142, %v1174
    %v1191 = vsel %vm1159, %v1143, %v1175
    %v1192 = vsel %vm1160, %v1144, %v1176
    %v1193 = vsel %vm1161, %v1145, %v1177
    %v1194 = vsel %vm1162, %v1146, %v1178
    %v1195 = vsel %vm1163, %v1147, %v1179
    %v1196 = vsel %vm1164, %v1148, %v1180
    %v1197 = vsel %vm1165, %v1149, %v1181
    %v1198 = vsel %vm575, %v1182, -1e+09
    %v1199 = vsel %vm576, %v1183, -1e+09
    %v1200 = vsel %vm577, %v1184, -1e+09
    %v1201 = vsel %vm578, %v1185, -1e+09
    %v1202 = vsel %vm579, %v1186, -1e+09
    %v1203 = vsel %vm580, %v1187, -1e+09
    %v1204 = vsel %vm581, %v1188, -1e+09
    %v1205 = vsel %vm582, %v1189, -1e+09
    %v1206 = vsel %vm583, %v1190, -1e+09
    %v1207 = vsel %vm584, %v1191, -1e+09
    %v1208 = vsel %vm585, %v1192, -1e+09
    %v1209 = vsel %vm586, %v1193, -1e+09
    %v1210 = vsel %vm587, %v1194, -1e+09
    %v1211 = vsel %vm588, %v1195, -1e+09
    %v1212 = vsel %vm589, %v1196, -1e+09
    %v1213 = vsel %vm590, %v1197, -1e+09
    %1214 = vmax.xlane.f32.xlu0 %v1198
    %v1215 = vpop.xlane.xlu0 %1214
    %1216 = vmax.xlane.f32.xlu0 %v1199
    %v1217 = vpop.xlane.xlu0 %1216
    %1218 = vmax.xlane.f32.xlu0 %v1200
    %v1219 = vpop.xlane.xlu0 %1218
    %1220 = vmax.xlane.f32.xlu0 %v1201
    %v1221 = vpop.xlane.xlu0 %1220
    %1222 = vmax.xlane.f32.xlu0 %v1202
    %v1223 = vpop.xlane.xlu0 %1222
    %1224 = vmax.xlane.f32.xlu0 %v1203
    %v1225 = vpop.xlane.xlu0 %1224
    %1226 = vmax.xlane.f32.xlu0 %v1204
    %v1227 = vpop.xlane.xlu0 %1226
    %1228 = vmax.xlane.f32.xlu0 %v1205
    %v1229 = vpop.xlane.xlu0 %1228
    %1230 = vmax.xlane.f32.xlu0 %v1206
    %v1231 = vpop.xlane.xlu0 %1230
    %1232 = vmax.xlane.f32.xlu0 %v1207
    %v1233 = vpop.xlane.xlu0 %1232
    %1234 = vmax.xlane.f32.xlu0 %v1208
    %v1235 = vpop.xlane.xlu0 %1234
    %1236 = vmax.xlane.f32.xlu0 %v1209
    %v1237 = vpop.xlane.xlu0 %1236
    %1238 = vmax.xlane.f32.xlu0 %v1210
    %v1239 = vpop.xlane.xlu0 %1238
    %1240 = vmax.xlane.f32.xlu0 %v1211
    %v1241 = vpop.xlane.xlu0 %1240
    %1242 = vmax.xlane.f32.xlu0 %v1212
    %v1243 = vpop.xlane.xlu0 %1242
    %1244 = vmax.xlane.f32.xlu0 %v1213
    %v1245 = vpop.xlane.xlu0 %1244
    %v1246 = vsub.f32 %v1198, %v1215
    %v1247 = vsub.f32 %v1199, %v1217
    %v1248 = vsub.f32 %v1200, %v1219
    %v1249 = vsub.f32 %v1201, %v1221
    %v1250 = vsub.f32 %v1202, %v1223
    %v1251 = vsub.f32 %v1203, %v1225
    %v1252 = vsub.f32 %v1204, %v1227
    %v1253 = vsub.f32 %v1205, %v1229
    %v1254 = vsub.f32 %v1206, %v1231
    %v1255 = vsub.f32 %v1207, %v1233
    %v1256 = vsub.f32 %v1208, %v1235
    %v1257 = vsub.f32 %v1209, %v1237
    %v1258 = vsub.f32 %v1210, %v1239
    %v1259 = vsub.f32 %v1211, %v1241
    %v1260 = vsub.f32 %v1212, %v1243
    %v1261 = vsub.f32 %v1213, %v1245
    %v1262 = vmul.f32 %v1246, 1.442695
    %v1263 = vpow.pop %v1262
    %v1264 = vmul.f32 %v1247, 1.442695
    %v1265 = vpow.pop %v1264
    %v1266 = vmul.f32 %v1248, 1.442695
    %v1267 = vpow.pop %v1266
    %v1268 = vmul.f32 %v1249, 1.442695
    %v1269 = vpow.pop %v1268
    %v1270 = vmul.f32 %v1250, 1.442695
    %v1271 = vpow.pop %v1270
    %v1272 = vmul.f32 %v1251, 1.442695
    %v1273 = vpow.pop %v1272
    %v1274 = vmul.f32 %v1252, 1.442695
    %v1275 = vpow.pop %v1274
    %v1276 = vmul.f32 %v1253, 1.442695
    %v1277 = vpow.pop %v1276
    %v1278 = vmul.f32 %v1254, 1.442695
    %v1279 = vpow.pop %v1278
    %v1280 = vmul.f32 %v1255, 1.442695
    %v1281 = vpow.pop %v1280
    %v1282 = vmul.f32 %v1256, 1.442695
    %v1283 = vpow.pop %v1282
    %v1284 = vmul.f32 %v1257, 1.442695
    %v1285 = vpow.pop %v1284
    %v1286 = vmul.f32 %v1258, 1.442695
    %v1287 = vpow.pop %v1286
    %v1288 = vmul.f32 %v1259, 1.442695
    %v1289 = vpow.pop %v1288
    %v1290 = vmul.f32 %v1260, 1.442695
    %v1291 = vpow.pop %v1290
    %v1292 = vmul.f32 %v1261, 1.442695
    %v1293 = vpow.pop %v1292
    %v1294 = vsel %vm575, %v1263, 0.0
    %v1295 = vsel %vm576, %v1265, 0.0
    %v1296 = vsel %vm577, %v1267, 0.0
    %v1297 = vsel %vm578, %v1269, 0.0
    %v1298 = vsel %vm579, %v1271, 0.0
    %v1299 = vsel %vm580, %v1273, 0.0
    %v1300 = vsel %vm581, %v1275, 0.0
    %v1301 = vsel %vm582, %v1277, 0.0
    %v1302 = vsel %vm583, %v1279, 0.0
    %v1303 = vsel %vm584, %v1281, 0.0
    %v1304 = vsel %vm585, %v1283, 0.0
    %v1305 = vsel %vm586, %v1285, 0.0
    %v1306 = vsel %vm587, %v1287, 0.0
    %v1307 = vsel %vm588, %v1289, 0.0
    %v1308 = vsel %vm589, %v1291, 0.0
    %v1309 = vsel %vm590, %v1293, 0.0
    %1310 = vadd.xlane.f32.xlu0 %v1294
    %v1311 = vpop.xlane.xlu0 %1310
    %1312 = vadd.xlane.f32.xlu0 %v1295
    %v1313 = vpop.xlane.xlu0 %1312
    %1314 = vadd.xlane.f32.xlu0 %v1296
    %v1315 = vpop.xlane.xlu0 %1314
    %1316 = vadd.xlane.f32.xlu0 %v1297
    %v1317 = vpop.xlane.xlu0 %1316
    %1318 = vadd.xlane.f32.xlu0 %v1298
    %v1319 = vpop.xlane.xlu0 %1318
    %1320 = vadd.xlane.f32.xlu0 %v1299
    %v1321 = vpop.xlane.xlu0 %1320
    %1322 = vadd.xlane.f32.xlu0 %v1300
    %v1323 = vpop.xlane.xlu0 %1322
    %1324 = vadd.xlane.f32.xlu0 %v1301
    %v1325 = vpop.xlane.xlu0 %1324
    %1326 = vadd.xlane.f32.xlu0 %v1302
    %v1327 = vpop.xlane.xlu0 %1326
    %1328 = vadd.xlane.f32.xlu0 %v1303
    %v1329 = vpop.xlane.xlu0 %1328
    %1330 = vadd.xlane.f32.xlu0 %v1304
    %v1331 = vpop.xlane.xlu0 %1330
    %1332 = vadd.xlane.f32.xlu0 %v1305
    %v1333 = vpop.xlane.xlu0 %1332
    %1334 = vadd.xlane.f32.xlu0 %v1306
    %v1335 = vpop.xlane.xlu0 %1334
    %1336 = vadd.xlane.f32.xlu0 %v1307
    %v1337 = vpop.xlane.xlu0 %1336
    %1338 = vadd.xlane.f32.xlu0 %v1308
    %v1339 = vpop.xlane.xlu0 %1338
    %1340 = vadd.xlane.f32.xlu0 %v1309
    %v1341 = vpop.xlane.xlu0 %1340
    %v1342 = vmax.f32 %v1311, 1e-12
    %v1343 = vmax.f32 %v1313, 1e-12
    %v1344 = vmax.f32 %v1315, 1e-12
    %v1345 = vmax.f32 %v1317, 1e-12
    %v1346 = vmax.f32 %v1319, 1e-12
    %v1347 = vmax.f32 %v1321, 1e-12
    %v1348 = vmax.f32 %v1323, 1e-12
    %v1349 = vmax.f32 %v1325, 1e-12
    %v1350 = vmax.f32 %v1327, 1e-12
    %v1351 = vmax.f32 %v1329, 1e-12
    %v1352 = vmax.f32 %v1331, 1e-12
    %v1353 = vmax.f32 %v1333, 1e-12
    %v1354 = vmax.f32 %v1335, 1e-12
    %v1355 = vmax.f32 %v1337, 1e-12
    %v1356 = vmax.f32 %v1339, 1e-12
    %v1357 = vmax.f32 %v1341, 1e-12
    %v1358 = vrcp.pop %v1342
    %v1359 = vrcp.pop %v1343
    %v1360 = vrcp.pop %v1344
    %v1361 = vrcp.pop %v1345
    %v1362 = vrcp.pop %v1346
    %v1363 = vrcp.pop %v1347
    %v1364 = vrcp.pop %v1348
    %v1365 = vrcp.pop %v1349
    %v1366 = vrcp.pop %v1350
    %v1367 = vrcp.pop %v1351
    %v1368 = vrcp.pop %v1352
    %v1369 = vrcp.pop %v1353
    %v1370 = vrcp.pop %v1354
    %v1371 = vrcp.pop %v1355
    %v1372 = vrcp.pop %v1356
    %v1373 = vrcp.pop %v1357
    %v1374 = vlaneseq
    %v1375 = vshrl.u32 %v1374, 7
    %v1376 = vsub.s32 0, %v1375
    %v1377 = vrot.slane %v1008, %v1376
    %v1378 = vmul.f32 %v1294, %v1377
    %v1379 = vmul.f32 %v1295, %v1377
    %v1380 = vmul.f32 %v1296, %v1377
    %v1381 = vmul.f32 %v1297, %v1377
    %v1382 = vmul.f32 %v1298, %v1377
    %v1383 = vmul.f32 %v1299, %v1377
    %v1384 = vmul.f32 %v1300, %v1377
    %v1385 = vmul.f32 %v1301, %v1377
    %v1386 = vmul.f32 %v1302, %v1377
    %v1387 = vmul.f32 %v1303, %v1377
    %v1388 = vmul.f32 %v1304, %v1377
    %v1389 = vmul.f32 %v1305, %v1377
    %v1390 = vmul.f32 %v1306, %v1377
    %v1391 = vmul.f32 %v1307, %v1377
    %v1392 = vmul.f32 %v1308, %v1377
    %v1393 = vmul.f32 %v1309, %v1377
    %1394 = vadd.xlane.f32.xlu0 %v1378
    %v1395 = vpop.xlane.xlu0 %1394
    %1396 = vadd.xlane.f32.xlu0 %v1379
    %v1397 = vpop.xlane.xlu0 %1396
    %1398 = vadd.xlane.f32.xlu0 %v1380
    %v1399 = vpop.xlane.xlu0 %1398
    %1400 = vadd.xlane.f32.xlu0 %v1381
    %v1401 = vpop.xlane.xlu0 %1400
    %1402 = vadd.xlane.f32.xlu0 %v1382
    %v1403 = vpop.xlane.xlu0 %1402
    %1404 = vadd.xlane.f32.xlu0 %v1383
    %v1405 = vpop.xlane.xlu0 %1404
    %1406 = vadd.xlane.f32.xlu0 %v1384
    %v1407 = vpop.xlane.xlu0 %1406
    %1408 = vadd.xlane.f32.xlu0 %v1385
    %v1409 = vpop.xlane.xlu0 %1408
    %1410 = vadd.xlane.f32.xlu0 %v1386
    %v1411 = vpop.xlane.xlu0 %1410
    %1412 = vadd.xlane.f32.xlu0 %v1387
    %v1413 = vpop.xlane.xlu0 %1412
    %1414 = vadd.xlane.f32.xlu0 %v1388
    %v1415 = vpop.xlane.xlu0 %1414
    %1416 = vadd.xlane.f32.xlu0 %v1389
    %v1417 = vpop.xlane.xlu0 %1416
    %1418 = vadd.xlane.f32.xlu0 %v1390
    %v1419 = vpop.xlane.xlu0 %1418
    %1420 = vadd.xlane.f32.xlu0 %v1391
    %v1421 = vpop.xlane.xlu0 %1420
    %1422 = vadd.xlane.f32.xlu0 %v1392
    %v1423 = vpop.xlane.xlu0 %1422
    %1424 = vadd.xlane.f32.xlu0 %v1393
    %v1425 = vpop.xlane.xlu0 %1424
    %v1426 = vmul.f32 %v1395, %v1358
    %v1427 = vmul.f32 %v1397, %v1359
    %v1428 = vmul.f32 %v1399, %v1360
    %v1429 = vmul.f32 %v1401, %v1361
    %v1430 = vmul.f32 %v1403, %v1362
    %v1431 = vmul.f32 %v1405, %v1363
    %v1432 = vmul.f32 %v1407, %v1364
    %v1433 = vmul.f32 %v1409, %v1365
    %v1434 = vmul.f32 %v1411, %v1366
    %v1435 = vmul.f32 %v1413, %v1367
    %v1436 = vmul.f32 %v1415, %v1368
    %v1437 = vmul.f32 %v1417, %v1369
    %v1438 = vmul.f32 %v1419, %v1370
    %v1439 = vmul.f32 %v1421, %v1371
    %v1440 = vmul.f32 %v1423, %v1372
    %v1441 = vmul.f32 %v1425, %v1373
    %v1442 = vadd.f32 %v1426, %v1027
    %v1443 = vadd.f32 %v1427, %v1027
    %v1444 = vadd.f32 %v1428, %v1027
    %v1445 = vadd.f32 %v1429, %v1027
    %v1446 = vadd.f32 %v1430, %v1027
    %v1447 = vadd.f32 %v1431, %v1027
    %v1448 = vadd.f32 %v1432, %v1027
    %v1449 = vadd.f32 %v1433, %v1027
    %v1450 = vadd.f32 %v1434, %v1027
    %v1451 = vadd.f32 %v1435, %v1027
    %v1452 = vadd.f32 %v1436, %v1027
    %v1453 = vadd.f32 %v1437, %v1027
    %v1454 = vadd.f32 %v1438, %v1027
    %v1455 = vadd.f32 %v1439, %v1027
    %v1456 = vadd.f32 %v1440, %v1027
    %v1457 = vadd.f32 %v1441, %v1027
    %v1458 = vmax.f32 %v1442, 0.0
    %v1459 = vmax.f32 %v1443, 0.0
    %v1460 = vmax.f32 %v1444, 0.0
    %v1461 = vmax.f32 %v1445, 0.0
    %v1462 = vmax.f32 %v1446, 0.0
    %v1463 = vmax.f32 %v1447, 0.0
    %v1464 = vmax.f32 %v1448, 0.0
    %v1465 = vmax.f32 %v1449, 0.0
    %v1466 = vmax.f32 %v1450, 0.0
    %v1467 = vmax.f32 %v1451, 0.0
    %v1468 = vmax.f32 %v1452, 0.0
    %v1469 = vmax.f32 %v1453, 0.0
    %v1470 = vmax.f32 %v1454, 0.0
    %v1471 = vmax.f32 %v1455, 0.0
    %v1472 = vmax.f32 %v1456, 0.0
    %v1473 = vmax.f32 %v1457, 0.0
    %v1474 = vtanh.pop %v1458
    %v1475 = vtanh.pop %v1459
    %v1476 = vtanh.pop %v1460
    %v1477 = vtanh.pop %v1461
    %v1478 = vtanh.pop %v1462
    %v1479 = vtanh.pop %v1463
    %v1480 = vtanh.pop %v1464
    %v1481 = vtanh.pop %v1465
    %v1482 = vtanh.pop %v1466
    %v1483 = vtanh.pop %v1467
    %v1484 = vtanh.pop %v1468
    %v1485 = vtanh.pop %v1469
    %v1486 = vtanh.pop %v1470
    %v1487 = vtanh.pop %v1471
    %v1488 = vtanh.pop %v1472
    %v1489 = vtanh.pop %v1473
    %1506 = vrot.lane.b32.xlu0 %v1474, 126
    %v1507 = vpop.permute.xlu0 %1506
    %1508 = vrot.lane.b32.xlu0 %v1475, 126
    %v1509 = vpop.permute.xlu0 %1508
    %1510 = vrot.lane.b32.xlu0 %v1476, 126
    %v1511 = vpop.permute.xlu0 %1510
    %1512 = vrot.lane.b32.xlu0 %v1477, 126
    %v1513 = vpop.permute.xlu0 %1512
    %1514 = vrot.lane.b32.xlu0 %v1478, 126
    %v1515 = vpop.permute.xlu0 %1514
    %1516 = vrot.lane.b32.xlu0 %v1479, 126
    %v1517 = vpop.permute.xlu0 %1516
    %1518 = vrot.lane.b32.xlu0 %v1480, 126
    %v1519 = vpop.permute.xlu0 %1518
    %1520 = vrot.lane.b32.xlu0 %v1481, 126
    %v1521 = vpop.permute.xlu0 %1520
    %1522 = vrot.lane.b32.xlu0 %v1482, 126
    %v1523 = vpop.permute.xlu0 %1522
    %1524 = vrot.lane.b32.xlu0 %v1483, 126
    %v1525 = vpop.permute.xlu0 %1524
    %1526 = vrot.lane.b32.xlu0 %v1484, 126
    %v1527 = vpop.permute.xlu0 %1526
    %1528 = vrot.lane.b32.xlu0 %v1485, 126
    %v1529 = vpop.permute.xlu0 %1528
    %1530 = vrot.lane.b32.xlu0 %v1486, 126
    %v1531 = vpop.permute.xlu0 %1530
    %1532 = vrot.lane.b32.xlu0 %v1487, 126
    %v1533 = vpop.permute.xlu0 %1532
    %1534 = vrot.lane.b32.xlu0 %v1488, 126
    %v1535 = vpop.permute.xlu0 %1534
    %1536 = vrot.lane.b32.xlu0 %v1489, 126
    %v1537 = vpop.permute.xlu0 %1536
    %1554 = vxpose.xlu0.b32.start [1/16] %v1507, 128
    %1555 = vxpose.xlu0.b32.cont [2/16] %v1509, 128
    %1556 = vxpose.xlu0.b32.cont [3/16] %v1511, 128
    %1557 = vxpose.xlu0.b32.cont [4/16] %v1513, 128
    %1558 = vxpose.xlu0.b32.cont [5/16] %v1515, 128
    %1559 = vxpose.xlu0.b32.cont [6/16] %v1517, 128
    %1560 = vxpose.xlu0.b32.cont [7/16] %v1519, 128
    %1561 = vxpose.xlu0.b32.cont [8/16] %v1521, 128
    %1562 = vxpose.xlu0.b32.cont [9/16] %v1523, 128
    %1563 = vxpose.xlu0.b32.cont [10/16] %v1525, 128
    %1564 = vxpose.xlu0.b32.cont [11/16] %v1527, 128
    %1565 = vxpose.xlu0.b32.cont [12/16] %v1529, 128
    %1566 = vxpose.xlu0.b32.cont [13/16] %v1531, 128
    %1567 = vxpose.xlu0.b32.cont [14/16] %v1533, 128
    %1568 = vxpose.xlu0.b32.cont [15/16] %v1535, 128
    %1569 = vxpose.xlu0.b32.end [16/16] %v1537, 128
    %v1570 = vpop.trf.xlu0
    %v1571 = vpop.trf.xlu0
    %v1572 = vpop.trf.xlu0
    %v1573 = vpop.trf.xlu0
    %v1574 = vpop.trf.xlu0
    %v1575 = vpop.trf.xlu0
    %v1576 = vpop.trf.xlu0
    %v1577 = vpop.trf.xlu0
    %v1578 = vpop.trf.xlu0
    %v1579 = vpop.trf.xlu0
    %v1580 = vpop.trf.xlu0
    %v1581 = vpop.trf.xlu0
    %v1582 = vpop.trf.xlu0
    %v1583 = vpop.trf.xlu0
    %v1584 = vpop.trf.xlu0
    %v1585 = vpop.trf.xlu0
    %1586 = vst [vmem:[#allocation8] sm:$0x1] %v1570
    // Predicated region
    $region30: #{tpu_custom_call.1} parent=1 // pred_check
      _
    $region31: #{tpu_custom_call.1} parent=1 // pred_check_branch
      %1588 = sbr.rel (0) target = $region33
    $region32: #{tpu_custom_call.1} parent=1 // pred_region
      %s1590 = ssub.s32 16, 16
      %1591 = vsyncadd [#allocation4], %s1590
      %s1593 = sshll.u32 [#allocation8], 4
      %s1594 = int_to_ptr.vmem [resolvable:$true] %s1593
      %1596 = dma.vmem_to_hbm [thread:$0]  %s1594, 16, %s4, [#allocation4]
    $region33: #{tpu_custom_call.1} parent=1 // pred_fallthru
      _
    // Predicated region
    $region34: #{tpu_custom_call.1} parent=1 // pred_check
      _
    $region35: #{tpu_custom_call.1} parent=1 // pred_check_branch
      %1598 = sbr.rel (0) target = $region37
    $region36: #{tpu_custom_call.1} parent=1 // pred_region
      %1599 = dma.done [#allocation4], 16
    $region37: #{tpu_custom_call.1} parent=1 // pred_fallthru
      _
    %1600 = vsyncpa [#allocation3], 1
    %1601 = vsyncpa [#allocation6], 1
    %1602 = vsyncpa [#allocation4], 1

</llo_original>
